<compile_context>
chip_gen: v7x
topology: tpu7x:2x2x1
jax: 0.10.0
libtpu: 0.0.40
codegen_flags: <defaults>
</compile_context>

<pallas_src>
import numpy as np
import jax
import jax.numpy as jnp
from jax.experimental import pallas as pl
from jax.experimental.pallas import tpu as pltpu


DIST_THRESH = 0.05
BIG = 1e30  # "unbounded" range sentinel / padding coordinate


def plane_refine_kernel(cl_ref, feat_ref, nrm_ref, off_ref, emin_ref, emax_ref,
                        w1_ref, s1_ref, b1_ref, w2_ref, s2_ref, b2_ref,
                        mask_out_ref, feat_out_ref):
    n_idx = pl.program_id(2)

    # Running-max accumulator lives in the (split, room)-resident output block (same
    # block index for every point tile).  h >= 0, so 0 is a safe identity.
    @pl.when(n_idx == 0)
    def _init():
        feat_out_ref[...] = jnp.zeros_like(feat_out_ref)

    # -------- lane-dense (P, TILE_N) plane-membership mask (computed once) ----------
    cl = cl_ref[0]                       # (3, TILE_N)  world-frame points
    nrm = nrm_ref[0]                     # (P, 3)
    emin = emin_ref[0]                   # (P, 3)
    emax = emax_ref[0]                   # (P, 3)
    dist = (nrm[:, 0:1] * cl[0:1, :]
            + nrm[:, 1:2] * cl[1:2, :]
            + nrm[:, 2:3] * cl[2:3, :]) - off_ref[0]                 # (P, TILE_N)
    mask = jnp.abs(dist) < DIST_THRESH
    for k in range(3):                                               # static, 3 axes
        ck = cl[k:k + 1, :]                                          # (1, TILE_N)
        mask = mask & (ck >= emin[:, k:k + 1]) & (ck < emax[:, k:k + 1])
    mask_f = mask.astype(jnp.float32)                                # (P, TILE_N)
    mask_out_ref[0] = mask_f                                         # lane-dense store

    # -------- fc1 / fc2 (1x1 conv) on the MXU (bf16 in, f32 acc) + BN + ReLU ---------
    x = feat_ref[0]                                                  # (C, TILE_N) bf16
    h = jnp.dot(w1_ref[...], x, preferred_element_type=jnp.float32)  # (C, TILE_N) f32
    h = jnp.maximum(h * s1_ref[...] + b1_ref[...], 0.0)
    h = jnp.dot(w2_ref[...], h.astype(jnp.bfloat16),
                preferred_element_type=jnp.float32)
    h = jnp.maximum(h * s2_ref[...] + b2_ref[...], 0.0)              # (C, TILE_N), >= 0

    # -------- per-plane masked max-pool: lane reductions, direct column updates ------
    # h >= 0 after ReLU, so mask-multiply + max == gather + max_pool2d over plane points.
    P = mask_f.shape[0]
    acc_ref = feat_out_ref.at[0, 0]                                  # (C, P) view
    for p in range(P):                                               # static unroll
        col = jnp.max(h * mask_f[p:p + 1, :], axis=-1, keepdims=True)   # (C, 1)
        acc_ref[:, p:p + 1] = jnp.maximum(acc_ref[:, p:p + 1], col)


def _effective_bounds(xyz_min, xyz_max):
    """torch.where(xyz_max != 0)[0][:2] range-check axes -> per-axis effective bounds."""
    P = xyz_min.shape[0]
    eff_min = np.full((P, 3), -BIG, np.float32)
    eff_max = np.full((P, 3), BIG, np.float32)
    for p in range(P):
        axes = np.nonzero(xyz_max[p] != 0)[0][:2]
        eff_min[p, axes] = xyz_min[p, axes]
        eff_max[p, axes] = xyz_max[p, axes]
    return eff_min, eff_max


def fold_bn(gamma, beta, mean, var, eps=1e-5):
    """Fold eval-mode BatchNorm into per-channel scale/bias."""
    scale = np.asarray(gamma, np.float32) / np.sqrt(np.asarray(var, np.float32) + eps)
    bias = np.asarray(beta, np.float32) - np.asarray(mean, np.float32) * scale
    return scale.astype(np.float32), bias.astype(np.float32)


def plane_refine_forward(xyz, centers, feature, plane_list,
                         w1, s1, b1, w2, s2, b2, tile_n=4096):
    """Batched Plane_refine_block_2 forward (all rooms in one pallas_call).

    xyz:        (B, N, 3)   room-local point coordinates
    centers:    (B, 3)      room centers
    feature:    (B, C, N, 1) NCHW features (PyTorch layout)
    plane_list: length-B list of dicts with 'center','normal','xyz_min','xyz_max' (P_r, 3)
    w1, w2:     (C_out, C_in) 1x1 conv weights; s*/b*: (C,) folded eval-BN scale/bias
    returns (mask (B, P_pad, N) f32 in {0,1}, plane_feat (B, P_pad, C), n_planes list)
    """
    xyz = np.asarray(xyz, np.float32)
    centers = np.asarray(centers, np.float32)
    feature = np.asarray(feature, np.float32)
    B, N, _ = xyz.shape
    C = feature.shape[1]

    # tile size: multiple of 128, default 4096 (sweepable), no larger than needed.
    tile_n = min(int(tile_n), ((N + 127) // 128) * 128)
    tile_n = max(128, (tile_n // 128) * 128)

    n_tiles = -(-N // tile_n)
    # v7x: guarantee >= 2 units of parallel work when B == 1 by splitting the point
    # range across the leading parallel axis; partial maxima combined in the epilogue.
    split = 2 if (B == 1 and n_tiles >= 2) else 1
    n_tiles = -(-n_tiles // split) * split
    tps = n_tiles // split
    n_pad = n_tiles * tile_n

    # pad plane tables to a common multiple-of-8 plane count (dummy planes never match)
    p_list = [len(np.asarray(pd['normal'])) for pd in plane_list]
    P = max(8, ((max(p_list) + 7) // 8) * 8)

    # clouds = xyz + room_center hoisted; padded points (BIG) never match any plane.
    clouds_cn = np.full((B, 3, n_pad), BIG, np.float32)
    clouds_cn[:, :, :N] = np.transpose(xyz + centers[:, None, :], (0, 2, 1))

    # feature is already NCHW: (B, C, N, 1) -> (B, C, n_pad); no host transpose.
    feat_cn = np.zeros((B, C, n_pad), np.float32)
    feat_cn[:, :, :N] = feature[:, :, :, 0]

    normal_pk = np.zeros((B, P, 3), np.float32)
    off_p1 = np.zeros((B, P, 1), np.float32)
    emin_pk = np.full((B, P, 3), BIG, np.float32)    # dummy planes: range check always fails
    emax_pk = np.full((B, P, 3), -BIG, np.float32)
    for r, pdict in enumerate(plane_list):
        pr = p_list[r]
        pc = np.asarray(pdict['center'], np.float32)
        pn = np.asarray(pdict['normal'], np.float32)
        e_min, e_max = _effective_bounds(np.asarray(pdict['xyz_min'], np.float32),
                                         np.asarray(pdict['xyz_max'], np.float32))
        normal_pk[r, :pr] = pn
        off_p1[r, :pr, 0] = np.sum(pc * pn, axis=-1)
        emin_pk[r, :pr] = e_min
        emax_pk[r, :pr] = e_max

    s1c = np.asarray(s1, np.float32).reshape(C, 1)
    b1c = np.asarray(b1, np.float32).reshape(C, 1)
    s2c = np.asarray(s2, np.float32).reshape(C, 1)
    b2c = np.asarray(b2, np.float32).reshape(C, 1)

    grid = (split, B, tps)

    def tile_map(s, b, n):        # per-point-tile arrays
        return (b, 0, s * tps + n)

    def room_map(s, b, n):        # per-room plane tables (resident across tiles)
        return (b, 0, 0)

    def const_map(s, b, n):       # weights / BN params
        return (0, 0)

    in_specs = [
        pl.BlockSpec((1, 3, tile_n), tile_map),      # clouds (3, N)
        pl.BlockSpec((1, C, tile_n), tile_map),      # feature (C, N) bf16
        pl.BlockSpec((1, P, 3), room_map),           # plane normals (P, 3)
        pl.BlockSpec((1, P, 1), room_map),           # plane offsets (P, 1)
        pl.BlockSpec((1, P, 3), room_map),           # effective min (P, 3)
        pl.BlockSpec((1, P, 3), room_map),           # effective max (P, 3)
        pl.BlockSpec((C, C), const_map),             # w1 (C_out, C_in) bf16
        pl.BlockSpec((C, 1), const_map),             # s1
        pl.BlockSpec((C, 1), const_map),             # b1
        pl.BlockSpec((C, C), const_map),             # w2 bf16
        pl.BlockSpec((C, 1), const_map),             # s2
        pl.BlockSpec((C, 1), const_map),             # b2
    ]
    out_specs = (
        pl.BlockSpec((1, P, tile_n), tile_map),                  # lane-dense mask
        pl.BlockSpec((1, 1, C, P), lambda s, b, n: (s, b, 0, 0)),  # resident (C, P) max
    )

    mask, feat_cp = pl.pallas_call(
        plane_refine_kernel,
        out_shape=(jax.ShapeDtypeStruct((B, P, n_pad), jnp.float32),
                   jax.ShapeDtypeStruct((split, B, C, P), jnp.float32)),
        grid=grid,
        in_specs=in_specs,
        out_specs=out_specs,
        compiler_params=pltpu.CompilerParams(
            dimension_semantics=("parallel", "parallel", "arbitrary"),
            vmem_limit_bytes=32 * 1024 * 1024),
    )(jnp.asarray(clouds_cn),
      jnp.asarray(feat_cn).astype(jnp.bfloat16),
      jnp.asarray(normal_pk), jnp.asarray(off_p1),
      jnp.asarray(emin_pk), jnp.asarray(emax_pk),
      jnp.asarray(np.asarray(w1, np.float32)).astype(jnp.bfloat16),
      jnp.asarray(s1c), jnp.asarray(b1c),
      jnp.asarray(np.asarray(w2, np.float32)).astype(jnp.bfloat16),
      jnp.asarray(s2c), jnp.asarray(b2c))

    # Epilogue: combine point-range halves (v7x split) and return (B, P, C).
    plane_feat = jnp.transpose(jnp.max(feat_cp, axis=0), (0, 2, 1))
    return mask[:, :, :N], plane_feat, p_list


def _reference_room(xyz_r, center_r, feat_r, pdict, w1, s1, b1, w2, s2, b2):
    """Pure-numpy per-room reference (f32)."""
    clouds_r = xyz_r + center_r[None, :]                                # (N, 3)
    pc = np.asarray(pdict['center'], np.float32)
    pn = np.asarray(pdict['normal'], np.float32)
    e_min, e_max = _effective_bounds(np.asarray(pdict['xyz_min'], np.float32),
                                     np.asarray(pdict['xyz_max'], np.float32))
    dist = np.abs(clouds_r @ pn.T - np.sum(pc * pn, -1)[None, :])       # (N, Pr)
    rmask = np.all((clouds_r[:, None, :] >= e_min[None]) &
                   (clouds_r[:, None, :] < e_max[None]), axis=-1)
    mask_ref = (dist < DIST_THRESH) & rmask                             # (N, Pr)
    feat_nc = feat_r[:, :, 0].T                                         # (N, C)
    h = np.maximum(feat_nc @ w1.T * s1[None, :] + b1[None, :], 0.0)
    h = np.maximum(h @ w2.T * s2[None, :] + b2[None, :], 0.0)
    feat_ref = np.max(mask_ref.astype(np.float32)[:, :, None] * h[:, None, :], axis=0)
    return mask_ref, feat_ref


if __name__ == "__main__":
    key = jax.random.PRNGKey(0)
    B, N, C = 2, 600, 32
    tile_n = 256                      # small tile so the demo exercises the accumulator
    k_xyz, k_ctr, k_feat, k_w1, k_w2, k_bn = jax.random.split(key, 6)

    xyz = jax.random.uniform(k_xyz, (B, N, 3), jnp.float32)              # room-local coords
    centers = jax.random.uniform(k_ctr, (B, 3), jnp.float32) * 2.0       # per-room offsets
    feature = jax.random.normal(k_feat, (B, C, N, 1), jnp.float32)       # NCHW like PyTorch

    # fc1/fc2 = Conv2d(C, C, 1x1, bias=False) + BatchNorm2d + ReLU (eval-mode BN folded)
    w1 = np.asarray(jax.random.normal(k_w1, (C, C), jnp.float32)) * 0.1  # (C_out, C_in)
    w2 = np.asarray(jax.random.normal(k_w2, (C, C), jnp.float32)) * 0.1
    kb = jax.random.split(k_bn, 8)

    def rand_bn(kg, kb_, km, kv):
        gamma = 1.0 + 0.1 * np.asarray(jax.random.normal(kg, (C,), jnp.float32))
        beta = 0.1 * np.asarray(jax.random.normal(kb_, (C,), jnp.float32))
        mean = 0.1 * np.asarray(jax.random.normal(km, (C,), jnp.float32))
        var = 1.0 + 0.1 * np.asarray(jax.random.uniform(kv, (C,), jnp.float32))
        return fold_bn(gamma, beta, mean, var)

    s1, b1 = rand_bn(*kb[:4])
    s2, b2 = rand_bn(*kb[4:])
    # TODO(synk): training-mode BatchNorm statistics over each gathered plane subset are
    # not reproduced; eval-mode (folded) BN is used instead.

    xyz_np = np.asarray(xyz)
    centers_np = np.asarray(centers)
    feat_np = np.asarray(feature)

    # synthetic per-room plane tables (stand-in for the pandas CSV in the PyTorch module)
    rng = np.random.RandomState(0)
    plane_list = []
    per_room_planes = [6, 7]
    for r in range(B):
        clouds_r = xyz_np[r] + centers_np[r][None, :]
        Pr = per_room_planes[r % len(per_room_planes)]
        pc = np.zeros((Pr, 3), np.float32)
        pn = np.zeros((Pr, 3), np.float32)
        pmin = np.zeros((Pr, 3), np.float32)
        pmax = np.zeros((Pr, 3), np.float32)
        for p in range(Pr):
            ax = p % 3
            pn[p, ax] = 1.0
            pc[p] = clouds_r[rng.randint(N)]
            others = [a for a in range(3) if a != ax]
            pmin[p, others] = clouds_r[:, others].min(0) + 0.05
            pmax[p, others] = clouds_r[:, others].max(0) - 0.05
            # pmax[p, ax] stays 0 -> torch.where(xyz_max != 0) picks the other two axes
        plane_list.append({'center': pc, 'normal': pn, 'xyz_min': pmin, 'xyz_max': pmax})

    mask, plane_feat, p_counts = plane_refine_forward(
        xyz_np, centers_np, feat_np, plane_list, w1, s1, b1, w2, s2, b2, tile_n=tile_n)
    mask = np.asarray(jax.block_until_ready(mask))
    plane_feat = np.asarray(jax.block_until_ready(plane_feat))

    # ---------- host glue reproducing the room_result dicts of the PyTorch module ------
    room_list = []
    for r in range(B):
        room_result = {'label_list': [], 'on_plane_idx_list': [],
                       'on_plane_feature_list': [], 'mask': []}
        for p in range(p_counts[r]):
            mrow = mask[r, p, :] > 0.5
            if mrow.sum() > 1:
                room_result['mask'].append(mrow)
                room_result['on_plane_idx_list'].append(np.nonzero(mrow)[0])
                room_result['on_plane_feature_list'].append(
                    plane_feat[r, p].reshape(1, C, 1, 1))               # (1, C, 1, 1) NCHW
        room_list.append(room_result)

    # ---------- pure numpy reference check (bf16 MXU operands -> loose tolerance) ------
    ok = True
    for r in range(B):
        Pr = p_counts[r]
        mask_ref, feat_ref = _reference_room(xyz_np[r], centers_np[r], feat_np[r],
                                             plane_list[r], w1, s1, b1, w2, s2, b2)
        ok &= bool(np.array_equal(mask[r, :Pr, :] > 0.5, mask_ref.T))
        ok &= bool(np.allclose(plane_feat[r, :Pr], feat_ref, rtol=5e-2, atol=2e-2))
        # padded planes must be empty / zero
        ok &= bool(np.all(mask[r, Pr:, :] < 0.5))
        ok &= bool(np.all(plane_feat[r, Pr:] == 0.0))

    # ---------- B == 1 run: exercises the split parallel axis (v7x two-TC path) --------
    mask1, feat1, _ = plane_refine_forward(
        xyz_np[:1], centers_np[:1], feat_np[:1], plane_list[:1],
        w1, s1, b1, w2, s2, b2, tile_n=tile_n)
    mask1 = np.asarray(jax.block_until_ready(mask1))
    feat1 = np.asarray(jax.block_until_ready(feat1))
    mask_ref0, feat_ref0 = _reference_room(xyz_np[0], centers_np[0], feat_np[0],
                                           plane_list[0], w1, s1, b1, w2, s2, b2)
    Pr0 = p_counts[0]
    ok &= bool(np.array_equal(mask1[0, :Pr0, :] > 0.5, mask_ref0.T))
    ok &= bool(np.allclose(feat1[0, :Pr0], feat_ref0, rtol=5e-2, atol=2e-2))

    print("KERNEL_OK" if ok else "KERNEL_MISMATCH")
</pallas_src>

<mosaic_0001>
module attributes {stable_mosaic.version = 11 : i64} {
  func.func @plane_refine_kernel(%arg0: i32, %arg1: i32, %arg2: i32, %arg3: memref<1x3x256xf32, #tpu.memory_space<vmem>>, %arg4: memref<1x32x256xbf16, #tpu.memory_space<vmem>>, %arg5: memref<1x8x3xf32, #tpu.memory_space<vmem>>, %arg6: memref<1x8x1xf32, #tpu.memory_space<vmem>>, %arg7: memref<1x8x3xf32, #tpu.memory_space<vmem>>, %arg8: memref<1x8x3xf32, #tpu.memory_space<vmem>>, %arg9: memref<32x32xbf16, #tpu.memory_space<vmem>>, %arg10: memref<32x1xf32, #tpu.memory_space<vmem>>, %arg11: memref<32x1xf32, #tpu.memory_space<vmem>>, %arg12: memref<32x32xbf16, #tpu.memory_space<vmem>>, %arg13: memref<32x1xf32, #tpu.memory_space<vmem>>, %arg14: memref<32x1xf32, #tpu.memory_space<vmem>>, %arg15: memref<1x8x256xf32, #tpu.memory_space<vmem>>, %arg16: memref<1x1x32x8xf32, #tpu.memory_space<vmem>>) attributes {dimension_semantics = [#tpu.dimension_semantics<parallel>, #tpu.dimension_semantics<parallel>, #tpu.dimension_semantics<arbitrary>], iteration_bounds = array<i64: 1, 2, 3>, scalar_prefetch = 0 : i64, scratch_operands = 0 : i64, tpu.core_type = #tpu.core_type<tc>, window_params = [{transform_indices = @transform_0, window_bounds = array<i64: 1, 3, 256>}, {transform_indices = @transform_1, window_bounds = array<i64: 1, 32, 256>}, {transform_indices = @transform_2, window_bounds = array<i64: 1, 8, 3>}, {transform_indices = @transform_3, window_bounds = array<i64: 1, 8, 1>}, {transform_indices = @transform_4, window_bounds = array<i64: 1, 8, 3>}, {transform_indices = @transform_5, window_bounds = array<i64: 1, 8, 3>}, {pipeline_mode = #tpu.pipeline_mode<synchronous>, transform_indices = @transform_6, window_bounds = array<i64: 32, 32>}, {pipeline_mode = #tpu.pipeline_mode<synchronous>, transform_indices = @transform_7, window_bounds = array<i64: 32, 1>}, {pipeline_mode = #tpu.pipeline_mode<synchronous>, transform_indices = @transform_8, window_bounds = array<i64: 32, 1>}, {pipeline_mode = #tpu.pipeline_mode<synchronous>, transform_indices = @transform_9, window_bounds = array<i64: 32, 32>}, {pipeline_mode = #tpu.pipeline_mode<synchronous>, transform_indices = @transform_10, window_bounds = array<i64: 32, 1>}, {pipeline_mode = #tpu.pipeline_mode<synchronous>, transform_indices = @transform_11, window_bounds = array<i64: 32, 1>}, {transform_indices = @transform_12, window_bounds = array<i64: 1, 8, 256>}, {transform_indices = @transform_13, window_bounds = array<i64: 1, 1, 32, 8>}]} {
    %c0_i32 = arith.constant 0 : i32
    %0 = arith.cmpi eq, %arg2, %c0_i32 : i32
    %1 = arith.extui %0 : i1 to i32
    %c0_i32_0 = arith.constant 0 : i32
    %2 = arith.cmpi ne, %1, %c0_i32_0 : i32
    scf.if %2 {
      %cst_134 = arith.constant 0.000000e+00 : f32
      %192 = vector.broadcast %cst_134 : f32 to vector<1x1x32x8xf32>
      %c0_135 = arith.constant 0 : index
      %c0_136 = arith.constant 0 : index
      %c0_137 = arith.constant 0 : index
      %c0_138 = arith.constant 0 : index
      %193 = vector.load %arg16[%c0_135, %c0_136, %c0_137, %c0_138] : memref<1x1x32x8xf32, #tpu.memory_space<vmem>>, vector<1x1x32x8xf32>
      tpu.vector_store %arg16[%c0_135, %c0_136, %c0_137, %c0_138], %192 {strides = array<i32>} : memref<1x1x32x8xf32, #tpu.memory_space<vmem>>, vector<1x1x32x8xf32>,
    } else {
    }
    %c0 = arith.constant 0 : index
    %c0_1 = arith.constant 0 : index
    %c0_2 = arith.constant 0 : index
    %3 = vector.load %arg3[%c0, %c0_1, %c0_2] : memref<1x3x256xf32, #tpu.memory_space<vmem>>, vector<1x3x256xf32>
    %4 = vector.shape_cast %3 : vector<1x3x256xf32> to vector<3x256xf32>
    %c0_3 = arith.constant 0 : index
    %c0_4 = arith.constant 0 : index
    %c0_5 = arith.constant 0 : index
    %5 = vector.load %arg5[%c0_3, %c0_4, %c0_5] : memref<1x8x3xf32, #tpu.memory_space<vmem>>, vector<1x8x3xf32>
    %6 = vector.shape_cast %5 : vector<1x8x3xf32> to vector<8x3xf32>
    %c0_6 = arith.constant 0 : index
    %c0_7 = arith.constant 0 : index
    %c0_8 = arith.constant 0 : index
    %7 = vector.load %arg7[%c0_6, %c0_7, %c0_8] : memref<1x8x3xf32, #tpu.memory_space<vmem>>, vector<1x8x3xf32>
    %8 = vector.shape_cast %7 : vector<1x8x3xf32> to vector<8x3xf32>
    %c0_9 = arith.constant 0 : index
    %c0_10 = arith.constant 0 : index
    %c0_11 = arith.constant 0 : index
    %9 = vector.load %arg8[%c0_9, %c0_10, %c0_11] : memref<1x8x3xf32, #tpu.memory_space<vmem>>, vector<1x8x3xf32>
    %10 = vector.shape_cast %9 : vector<1x8x3xf32> to vector<8x3xf32>
    %11 = vector.extract_strided_slice %6 {offsets = [0, 0], sizes = [8, 1], strides = [1, 1]} : vector<8x3xf32> to vector<8x1xf32>
    %12 = vector.extract_strided_slice %4 {offsets = [0, 0], sizes = [1, 256], strides = [1, 1]} : vector<3x256xf32> to vector<1x256xf32>
    %13 = vector.broadcast %11 : vector<8x1xf32> to vector<8x256xf32>
    %14 = vector.broadcast %12 : vector<1x256xf32> to vector<8x256xf32>
    %15 = arith.mulf %13, %14 : vector<8x256xf32>
    %16 = vector.extract_strided_slice %6 {offsets = [0, 1], sizes = [8, 1], strides = [1, 1]} : vector<8x3xf32> to vector<8x1xf32>
    %17 = vector.extract_strided_slice %4 {offsets = [1, 0], sizes = [1, 256], strides = [1, 1]} : vector<3x256xf32> to vector<1x256xf32>
    %18 = vector.broadcast %16 : vector<8x1xf32> to vector<8x256xf32>
    %19 = vector.broadcast %17 : vector<1x256xf32> to vector<8x256xf32>
    %20 = arith.mulf %18, %19 : vector<8x256xf32>
    %21 = arith.addf %15, %20 : vector<8x256xf32>
    %22 = vector.extract_strided_slice %6 {offsets = [0, 2], sizes = [8, 1], strides = [1, 1]} : vector<8x3xf32> to vector<8x1xf32>
    %23 = vector.extract_strided_slice %4 {offsets = [2, 0], sizes = [1, 256], strides = [1, 1]} : vector<3x256xf32> to vector<1x256xf32>
    %24 = vector.broadcast %22 : vector<8x1xf32> to vector<8x256xf32>
    %25 = vector.broadcast %23 : vector<1x256xf32> to vector<8x256xf32>
    %26 = arith.mulf %24, %25 : vector<8x256xf32>
    %27 = arith.addf %21, %26 : vector<8x256xf32>
    %c0_12 = arith.constant 0 : index
    %c0_13 = arith.constant 0 : index
    %c0_14 = arith.constant 0 : index
    %28 = vector.load %arg6[%c0_12, %c0_13, %c0_14] : memref<1x8x1xf32, #tpu.memory_space<vmem>>, vector<1x8x1xf32>
    %29 = vector.shape_cast %28 : vector<1x8x1xf32> to vector<8x1xf32>
    %30 = vector.broadcast %29 : vector<8x1xf32> to vector<8x256xf32>
    %31 = arith.subf %27, %30 : vector<8x256xf32>
    %32 = math.absf %31 : vector<8x256xf32>
    %cst = arith.constant 5.000000e-02 : f32
    %33 = vector.broadcast %cst : f32 to vector<8x256xf32>
    %34 = arith.cmpf olt, %32, %33 : vector<8x256xf32>
    %35 = vector.extract_strided_slice %4 {offsets = [0, 0], sizes = [1, 256], strides = [1, 1]} : vector<3x256xf32> to vector<1x256xf32>
    %36 = vector.extract_strided_slice %8 {offsets = [0, 0], sizes = [8, 1], strides = [1, 1]} : vector<8x3xf32> to vector<8x1xf32>
    %37 = vector.broadcast %35 : vector<1x256xf32> to vector<8x256xf32>
    %38 = vector.broadcast %36 : vector<8x1xf32> to vector<8x256xf32>
    %39 = arith.cmpf oge, %37, %38 : vector<8x256xf32>
    %40 = arith.andi %34, %39 : vector<8x256xi1>
    %41 = vector.extract_strided_slice %10 {offsets = [0, 0], sizes = [8, 1], strides = [1, 1]} : vector<8x3xf32> to vector<8x1xf32>
    %42 = vector.broadcast %35 : vector<1x256xf32> to vector<8x256xf32>
    %43 = vector.broadcast %41 : vector<8x1xf32> to vector<8x256xf32>
    %44 = arith.cmpf olt, %42, %43 : vector<8x256xf32>
    %45 = arith.andi %40, %44 : vector<8x256xi1>
    %46 = vector.extract_strided_slice %4 {offsets = [1, 0], sizes = [1, 256], strides = [1, 1]} : vector<3x256xf32> to vector<1x256xf32>
    %47 = vector.extract_strided_slice %8 {offsets = [0, 1], sizes = [8, 1], strides = [1, 1]} : vector<8x3xf32> to vector<8x1xf32>
    %48 = vector.broadcast %46 : vector<1x256xf32> to vector<8x256xf32>
    %49 = vector.broadcast %47 : vector<8x1xf32> to vector<8x256xf32>
    %50 = arith.cmpf oge, %48, %49 : vector<8x256xf32>
    %51 = arith.andi %45, %50 : vector<8x256xi1>
    %52 = vector.extract_strided_slice %10 {offsets = [0, 1], sizes = [8, 1], strides = [1, 1]} : vector<8x3xf32> to vector<8x1xf32>
    %53 = vector.broadcast %46 : vector<1x256xf32> to vector<8x256xf32>
    %54 = vector.broadcast %52 : vector<8x1xf32> to vector<8x256xf32>
    %55 = arith.cmpf olt, %53, %54 : vector<8x256xf32>
    %56 = arith.andi %51, %55 : vector<8x256xi1>
    %57 = vector.extract_strided_slice %4 {offsets = [2, 0], sizes = [1, 256], strides = [1, 1]} : vector<3x256xf32> to vector<1x256xf32>
    %58 = vector.extract_strided_slice %8 {offsets = [0, 2], sizes = [8, 1], strides = [1, 1]} : vector<8x3xf32> to vector<8x1xf32>
    %59 = vector.broadcast %57 : vector<1x256xf32> to vector<8x256xf32>
    %60 = vector.broadcast %58 : vector<8x1xf32> to vector<8x256xf32>
    %61 = arith.cmpf oge, %59, %60 : vector<8x256xf32>
    %62 = arith.andi %56, %61 : vector<8x256xi1>
    %63 = vector.extract_strided_slice %10 {offsets = [0, 2], sizes = [8, 1], strides = [1, 1]} : vector<8x3xf32> to vector<8x1xf32>
    %64 = vector.broadcast %57 : vector<1x256xf32> to vector<8x256xf32>
    %65 = vector.broadcast %63 : vector<8x1xf32> to vector<8x256xf32>
    %66 = arith.cmpf olt, %64, %65 : vector<8x256xf32>
    %67 = arith.andi %62, %66 : vector<8x256xi1>
    %68 = arith.extui %67 : vector<8x256xi1> to vector<8x256xi32>
    %69 = arith.sitofp %68 : vector<8x256xi32> to vector<8x256xf32>
    %c0_15 = arith.constant 0 : index
    %c0_16 = arith.constant 0 : index
    %c0_17 = arith.constant 0 : index
    %70 = vector.load %arg15[%c0_15, %c0_16, %c0_17] : memref<1x8x256xf32, #tpu.memory_space<vmem>>, vector<1x8x256xf32>
    %71 = vector.shape_cast %70 : vector<1x8x256xf32> to vector<8x256xf32>
    %72 = vector.shape_cast %69 : vector<8x256xf32> to vector<1x8x256xf32>
    tpu.vector_store %arg15[%c0_15, %c0_16, %c0_17], %72 {strides = array<i32>} : memref<1x8x256xf32, #tpu.memory_space<vmem>>, vector<1x8x256xf32>,
    %c0_18 = arith.constant 0 : index
    %c0_19 = arith.constant 0 : index
    %c0_20 = arith.constant 0 : index
    %73 = vector.load %arg4[%c0_18, %c0_19, %c0_20] : memref<1x32x256xbf16, #tpu.memory_space<vmem>>, vector<1x32x256xbf16>
    %74 = vector.shape_cast %73 : vector<1x32x256xbf16> to vector<32x256xbf16>
    %c0_21 = arith.constant 0 : index
    %c0_22 = arith.constant 0 : index
    %75 = vector.load %arg9[%c0_21, %c0_22] : memref<32x32xbf16, #tpu.memory_space<vmem>>, vector<32x32xbf16>
    %cst_23 = arith.constant dense<0.000000e+00> : vector<32x256xf32>
    %76 = tpu.matmul %75, %74, %cst_23 {dimension_numbers = #tpu.dot_dimension_numbers<[1], [0], [0], [1], [0, 0, 1, 1], [], []>} : vector<32x32xbf16>, vector<32x256xbf16>, vector<32x256xf32> -> vector<32x256xf32>
    %c0_24 = arith.constant 0 : index
    %c0_25 = arith.constant 0 : index
    %77 = vector.load %arg10[%c0_24, %c0_25] : memref<32x1xf32, #tpu.memory_space<vmem>>, vector<32x1xf32>
    %78 = vector.broadcast %77 : vector<32x1xf32> to vector<32x256xf32>
    %79 = arith.mulf %76, %78 : vector<32x256xf32>
    %c0_26 = arith.constant 0 : index
    %c0_27 = arith.constant 0 : index
    %80 = vector.load %arg11[%c0_26, %c0_27] : memref<32x1xf32, #tpu.memory_space<vmem>>, vector<32x1xf32>
    %81 = vector.broadcast %80 : vector<32x1xf32> to vector<32x256xf32>
    %82 = arith.addf %79, %81 : vector<32x256xf32>
    %cst_28 = arith.constant 0.000000e+00 : f32
    %83 = vector.broadcast %cst_28 : f32 to vector<32x256xf32>
    %84 = arith.maximumf %82, %83 : vector<32x256xf32>
    %c0_29 = arith.constant 0 : index
    %c0_30 = arith.constant 0 : index
    %85 = vector.load %arg12[%c0_29, %c0_30] : memref<32x32xbf16, #tpu.memory_space<vmem>>, vector<32x32xbf16>
    %86 = arith.truncf %84 : vector<32x256xf32> to vector<32x256xbf16>
    %cst_31 = arith.constant dense<0.000000e+00> : vector<32x256xf32>
    %87 = tpu.matmul %85, %86, %cst_31 {dimension_numbers = #tpu.dot_dimension_numbers<[1], [0], [0], [1], [0, 0, 1, 1], [], []>} : vector<32x32xbf16>, vector<32x256xbf16>, vector<32x256xf32> -> vector<32x256xf32>
    %c0_32 = arith.constant 0 : index
    %c0_33 = arith.constant 0 : index
    %88 = vector.load %arg13[%c0_32, %c0_33] : memref<32x1xf32, #tpu.memory_space<vmem>>, vector<32x1xf32>
    %89 = vector.broadcast %88 : vector<32x1xf32> to vector<32x256xf32>
    %90 = arith.mulf %87, %89 : vector<32x256xf32>
    %c0_34 = arith.constant 0 : index
    %c0_35 = arith.constant 0 : index
    %91 = vector.load %arg14[%c0_34, %c0_35] : memref<32x1xf32, #tpu.memory_space<vmem>>, vector<32x1xf32>
    %92 = vector.broadcast %91 : vector<32x1xf32> to vector<32x256xf32>
    %93 = arith.addf %90, %92 : vector<32x256xf32>
    %cst_36 = arith.constant 0.000000e+00 : f32
    %94 = vector.broadcast %cst_36 : f32 to vector<32x256xf32>
    %95 = arith.maximumf %93, %94 : vector<32x256xf32>
    %96 = vector.extract_strided_slice %69 {offsets = [0, 0], sizes = [1, 256], strides = [1, 1]} : vector<8x256xf32> to vector<1x256xf32>
    %97 = vector.broadcast %96 : vector<1x256xf32> to vector<32x256xf32>
    %98 = arith.mulf %95, %97 : vector<32x256xf32>
    %cst_37 = arith.constant dense<0xFF800000> : vector<32xf32>
    %99 = vector.multi_reduction <maximumf>, %98, %cst_37 [1] : vector<32x256xf32> to vector<32xf32>
    %100 = vector.shape_cast %99 : vector<32xf32> to vector<32x1xf32>
    %c0_i32_38 = arith.constant 0 : i32
    %c0_i32_39 = arith.constant 0 : i32
    %c0_i32_40 = arith.constant 0 : i32
    %c0_i32_41 = arith.constant 0 : i32
    %101 = tpu.memref_slice %arg16[%c0_i32_38, %c0_i32_39, %c0_i32_40, %c0_i32_41] : memref<1x1x32x8xf32, #tpu.memory_space<vmem>> -> memref<1x1x32x8xf32, #tpu.memory_space<vmem>>
    %102 = tpu.memref_squeeze %101 : memref<1x1x32x8xf32, #tpu.memory_space<vmem>> -> memref<32x8xf32, #tpu.memory_space<vmem>>
    %c0_42 = arith.constant 0 : index
    %c0_43 = arith.constant 0 : index
    %103 = vector.load %102[%c0_42, %c0_43] : memref<32x8xf32, #tpu.memory_space<vmem>>, vector<32x1xf32>
    %104 = arith.maximumf %103, %100 : vector<32x1xf32>
    %c0_i32_44 = arith.constant 0 : i32
    %c0_i32_45 = arith.constant 0 : i32
    %c0_i32_46 = arith.constant 0 : i32
    %c0_i32_47 = arith.constant 0 : i32
    %105 = tpu.memref_slice %arg16[%c0_i32_44, %c0_i32_45, %c0_i32_46, %c0_i32_47] : memref<1x1x32x8xf32, #tpu.memory_space<vmem>> -> memref<1x1x32x8xf32, #tpu.memory_space<vmem>>
    %106 = tpu.memref_squeeze %105 : memref<1x1x32x8xf32, #tpu.memory_space<vmem>> -> memref<32x8xf32, #tpu.memory_space<vmem>>
    %c0_48 = arith.constant 0 : index
    %c0_49 = arith.constant 0 : index
    %107 = vector.load %106[%c0_48, %c0_49] : memref<32x8xf32, #tpu.memory_space<vmem>>, vector<32x1xf32>
    tpu.vector_store %106[%c0_48, %c0_49], %104 {strides = array<i32>} : memref<32x8xf32, #tpu.memory_space<vmem>>, vector<32x1xf32>,
    %108 = vector.extract_strided_slice %69 {offsets = [1, 0], sizes = [1, 256], strides = [1, 1]} : vector<8x256xf32> to vector<1x256xf32>
    %109 = vector.broadcast %108 : vector<1x256xf32> to vector<32x256xf32>
    %110 = arith.mulf %95, %109 : vector<32x256xf32>
    %cst_50 = arith.constant dense<0xFF800000> : vector<32xf32>
    %111 = vector.multi_reduction <maximumf>, %110, %cst_50 [1] : vector<32x256xf32> to vector<32xf32>
    %112 = vector.shape_cast %111 : vector<32xf32> to vector<32x1xf32>
    %c0_i32_51 = arith.constant 0 : i32
    %c0_i32_52 = arith.constant 0 : i32
    %c0_i32_53 = arith.constant 0 : i32
    %c0_i32_54 = arith.constant 0 : i32
    %113 = tpu.memref_slice %arg16[%c0_i32_51, %c0_i32_52, %c0_i32_53, %c0_i32_54] : memref<1x1x32x8xf32, #tpu.memory_space<vmem>> -> memref<1x1x32x8xf32, #tpu.memory_space<vmem>>
    %114 = tpu.memref_squeeze %113 : memref<1x1x32x8xf32, #tpu.memory_space<vmem>> -> memref<32x8xf32, #tpu.memory_space<vmem>>
    %c0_55 = arith.constant 0 : index
    %c1 = arith.constant 1 : index
    %115 = vector.load %114[%c0_55, %c1] : memref<32x8xf32, #tpu.memory_space<vmem>>, vector<32x1xf32>
    %116 = arith.maximumf %115, %112 : vector<32x1xf32>
    %c0_i32_56 = arith.constant 0 : i32
    %c0_i32_57 = arith.constant 0 : i32
    %c0_i32_58 = arith.constant 0 : i32
    %c0_i32_59 = arith.constant 0 : i32
    %117 = tpu.memref_slice %arg16[%c0_i32_56, %c0_i32_57, %c0_i32_58, %c0_i32_59] : memref<1x1x32x8xf32, #tpu.memory_space<vmem>> -> memref<1x1x32x8xf32, #tpu.memory_space<vmem>>
    %118 = tpu.memref_squeeze %117 : memref<1x1x32x8xf32, #tpu.memory_space<vmem>> -> memref<32x8xf32, #tpu.memory_space<vmem>>
    %c0_60 = arith.constant 0 : index
    %c1_61 = arith.constant 1 : index
    %119 = vector.load %118[%c0_60, %c1_61] : memref<32x8xf32, #tpu.memory_space<vmem>>, vector<32x1xf32>
    tpu.vector_store %118[%c0_60, %c1_61], %116 {strides = array<i32>} : memref<32x8xf32, #tpu.memory_space<vmem>>, vector<32x1xf32>,
    %120 = vector.extract_strided_slice %69 {offsets = [2, 0], sizes = [1, 256], strides = [1, 1]} : vector<8x256xf32> to vector<1x256xf32>
    %121 = vector.broadcast %120 : vector<1x256xf32> to vector<32x256xf32>
    %122 = arith.mulf %95, %121 : vector<32x256xf32>
    %cst_62 = arith.constant dense<0xFF800000> : vector<32xf32>
    %123 = vector.multi_reduction <maximumf>, %122, %cst_62 [1] : vector<32x256xf32> to vector<32xf32>
    %124 = vector.shape_cast %123 : vector<32xf32> to vector<32x1xf32>
    %c0_i32_63 = arith.constant 0 : i32
    %c0_i32_64 = arith.constant 0 : i32
    %c0_i32_65 = arith.constant 0 : i32
    %c0_i32_66 = arith.constant 0 : i32
    %125 = tpu.memref_slice %arg16[%c0_i32_63, %c0_i32_64, %c0_i32_65, %c0_i32_66] : memref<1x1x32x8xf32, #tpu.memory_space<vmem>> -> memref<1x1x32x8xf32, #tpu.memory_space<vmem>>
    %126 = tpu.memref_squeeze %125 : memref<1x1x32x8xf32, #tpu.memory_space<vmem>> -> memref<32x8xf32, #tpu.memory_space<vmem>>
    %c0_67 = arith.constant 0 : index
    %c2 = arith.constant 2 : index
    %127 = vector.load %126[%c0_67, %c2] : memref<32x8xf32, #tpu.memory_space<vmem>>, vector<32x1xf32>
    %128 = arith.maximumf %127, %124 : vector<32x1xf32>
    %c0_i32_68 = arith.constant 0 : i32
    %c0_i32_69 = arith.constant 0 : i32
    %c0_i32_70 = arith.constant 0 : i32
    %c0_i32_71 = arith.constant 0 : i32
    %129 = tpu.memref_slice %arg16[%c0_i32_68, %c0_i32_69, %c0_i32_70, %c0_i32_71] : memref<1x1x32x8xf32, #tpu.memory_space<vmem>> -> memref<1x1x32x8xf32, #tpu.memory_space<vmem>>
    %130 = tpu.memref_squeeze %129 : memref<1x1x32x8xf32, #tpu.memory_space<vmem>> -> memref<32x8xf32, #tpu.memory_space<vmem>>
    %c0_72 = arith.constant 0 : index
    %c2_73 = arith.constant 2 : index
    %131 = vector.load %130[%c0_72, %c2_73] : memref<32x8xf32, #tpu.memory_space<vmem>>, vector<32x1xf32>
    tpu.vector_store %130[%c0_72, %c2_73], %128 {strides = array<i32>} : memref<32x8xf32, #tpu.memory_space<vmem>>, vector<32x1xf32>,
    %132 = vector.extract_strided_slice %69 {offsets = [3, 0], sizes = [1, 256], strides = [1, 1]} : vector<8x256xf32> to vector<1x256xf32>
    %133 = vector.broadcast %132 : vector<1x256xf32> to vector<32x256xf32>
    %134 = arith.mulf %95, %133 : vector<32x256xf32>
    %cst_74 = arith.constant dense<0xFF800000> : vector<32xf32>
    %135 = vector.multi_reduction <maximumf>, %134, %cst_74 [1] : vector<32x256xf32> to vector<32xf32>
    %136 = vector.shape_cast %135 : vector<32xf32> to vector<32x1xf32>
    %c0_i32_75 = arith.constant 0 : i32
    %c0_i32_76 = arith.constant 0 : i32
    %c0_i32_77 = arith.constant 0 : i32
    %c0_i32_78 = arith.constant 0 : i32
    %137 = tpu.memref_slice %arg16[%c0_i32_75, %c0_i32_76, %c0_i32_77, %c0_i32_78] : memref<1x1x32x8xf32, #tpu.memory_space<vmem>> -> memref<1x1x32x8xf32, #tpu.memory_space<vmem>>
    %138 = tpu.memref_squeeze %137 : memref<1x1x32x8xf32, #tpu.memory_space<vmem>> -> memref<32x8xf32, #tpu.memory_space<vmem>>
    %c0_79 = arith.constant 0 : index
    %c3 = arith.constant 3 : index
    %139 = vector.load %138[%c0_79, %c3] : memref<32x8xf32, #tpu.memory_space<vmem>>, vector<32x1xf32>
    %140 = arith.maximumf %139, %136 : vector<32x1xf32>
    %c0_i32_80 = arith.constant 0 : i32
    %c0_i32_81 = arith.constant 0 : i32
    %c0_i32_82 = arith.constant 0 : i32
    %c0_i32_83 = arith.constant 0 : i32
    %141 = tpu.memref_slice %arg16[%c0_i32_80, %c0_i32_81, %c0_i32_82, %c0_i32_83] : memref<1x1x32x8xf32, #tpu.memory_space<vmem>> -> memref<1x1x32x8xf32, #tpu.memory_space<vmem>>
    %142 = tpu.memref_squeeze %141 : memref<1x1x32x8xf32, #tpu.memory_space<vmem>> -> memref<32x8xf32, #tpu.memory_space<vmem>>
    %c0_84 = arith.constant 0 : index
    %c3_85 = arith.constant 3 : index
    %143 = vector.load %142[%c0_84, %c3_85] : memref<32x8xf32, #tpu.memory_space<vmem>>, vector<32x1xf32>
    tpu.vector_store %142[%c0_84, %c3_85], %140 {strides = array<i32>} : memref<32x8xf32, #tpu.memory_space<vmem>>, vector<32x1xf32>,
    %144 = vector.extract_strided_slice %69 {offsets = [4, 0], sizes = [1, 256], strides = [1, 1]} : vector<8x256xf32> to vector<1x256xf32>
    %145 = vector.broadcast %144 : vector<1x256xf32> to vector<32x256xf32>
    %146 = arith.mulf %95, %145 : vector<32x256xf32>
    %cst_86 = arith.constant dense<0xFF800000> : vector<32xf32>
    %147 = vector.multi_reduction <maximumf>, %146, %cst_86 [1] : vector<32x256xf32> to vector<32xf32>
    %148 = vector.shape_cast %147 : vector<32xf32> to vector<32x1xf32>
    %c0_i32_87 = arith.constant 0 : i32
    %c0_i32_88 = arith.constant 0 : i32
    %c0_i32_89 = arith.constant 0 : i32
    %c0_i32_90 = arith.constant 0 : i32
    %149 = tpu.memref_slice %arg16[%c0_i32_87, %c0_i32_88, %c0_i32_89, %c0_i32_90] : memref<1x1x32x8xf32, #tpu.memory_space<vmem>> -> memref<1x1x32x8xf32, #tpu.memory_space<vmem>>
    %150 = tpu.memref_squeeze %149 : memref<1x1x32x8xf32, #tpu.memory_space<vmem>> -> memref<32x8xf32, #tpu.memory_space<vmem>>
    %c0_91 = arith.constant 0 : index
    %c4 = arith.constant 4 : index
    %151 = vector.load %150[%c0_91, %c4] : memref<32x8xf32, #tpu.memory_space<vmem>>, vector<32x1xf32>
    %152 = arith.maximumf %151, %148 : vector<32x1xf32>
    %c0_i32_92 = arith.constant 0 : i32
    %c0_i32_93 = arith.constant 0 : i32
    %c0_i32_94 = arith.constant 0 : i32
    %c0_i32_95 = arith.constant 0 : i32
    %153 = tpu.memref_slice %arg16[%c0_i32_92, %c0_i32_93, %c0_i32_94, %c0_i32_95] : memref<1x1x32x8xf32, #tpu.memory_space<vmem>> -> memref<1x1x32x8xf32, #tpu.memory_space<vmem>>
    %154 = tpu.memref_squeeze %153 : memref<1x1x32x8xf32, #tpu.memory_space<vmem>> -> memref<32x8xf32, #tpu.memory_space<vmem>>
    %c0_96 = arith.constant 0 : index
    %c4_97 = arith.constant 4 : index
    %155 = vector.load %154[%c0_96, %c4_97] : memref<32x8xf32, #tpu.memory_space<vmem>>, vector<32x1xf32>
    tpu.vector_store %154[%c0_96, %c4_97], %152 {strides = array<i32>} : memref<32x8xf32, #tpu.memory_space<vmem>>, vector<32x1xf32>,
    %156 = vector.extract_strided_slice %69 {offsets = [5, 0], sizes = [1, 256], strides = [1, 1]} : vector<8x256xf32> to vector<1x256xf32>
    %157 = vector.broadcast %156 : vector<1x256xf32> to vector<32x256xf32>
    %158 = arith.mulf %95, %157 : vector<32x256xf32>
    %cst_98 = arith.constant dense<0xFF800000> : vector<32xf32>
    %159 = vector.multi_reduction <maximumf>, %158, %cst_98 [1] : vector<32x256xf32> to vector<32xf32>
    %160 = vector.shape_cast %159 : vector<32xf32> to vector<32x1xf32>
    %c0_i32_99 = arith.constant 0 : i32
    %c0_i32_100 = arith.constant 0 : i32
    %c0_i32_101 = arith.constant 0 : i32
    %c0_i32_102 = arith.constant 0 : i32
    %161 = tpu.memref_slice %arg16[%c0_i32_99, %c0_i32_100, %c0_i32_101, %c0_i32_102] : memref<1x1x32x8xf32, #tpu.memory_space<vmem>> -> memref<1x1x32x8xf32, #tpu.memory_space<vmem>>
    %162 = tpu.memref_squeeze %161 : memref<1x1x32x8xf32, #tpu.memory_space<vmem>> -> memref<32x8xf32, #tpu.memory_space<vmem>>
    %c0_103 = arith.constant 0 : index
    %c5 = arith.constant 5 : index
    %163 = vector.load %162[%c0_103, %c5] : memref<32x8xf32, #tpu.memory_space<vmem>>, vector<32x1xf32>
    %164 = arith.maximumf %163, %160 : vector<32x1xf32>
    %c0_i32_104 = arith.constant 0 : i32
    %c0_i32_105 = arith.constant 0 : i32
    %c0_i32_106 = arith.constant 0 : i32
    %c0_i32_107 = arith.constant 0 : i32
    %165 = tpu.memref_slice %arg16[%c0_i32_104, %c0_i32_105, %c0_i32_106, %c0_i32_107] : memref<1x1x32x8xf32, #tpu.memory_space<vmem>> -> memref<1x1x32x8xf32, #tpu.memory_space<vmem>>
    %166 = tpu.memref_squeeze %165 : memref<1x1x32x8xf32, #tpu.memory_space<vmem>> -> memref<32x8xf32, #tpu.memory_space<vmem>>
    %c0_108 = arith.constant 0 : index
    %c5_109 = arith.constant 5 : index
    %167 = vector.load %166[%c0_108, %c5_109] : memref<32x8xf32, #tpu.memory_space<vmem>>, vector<32x1xf32>
    tpu.vector_store %166[%c0_108, %c5_109], %164 {strides = array<i32>} : memref<32x8xf32, #tpu.memory_space<vmem>>, vector<32x1xf32>,
    %168 = vector.extract_strided_slice %69 {offsets = [6, 0], sizes = [1, 256], strides = [1, 1]} : vector<8x256xf32> to vector<1x256xf32>
    %169 = vector.broadcast %168 : vector<1x256xf32> to vector<32x256xf32>
    %170 = arith.mulf %95, %169 : vector<32x256xf32>
    %cst_110 = arith.constant dense<0xFF800000> : vector<32xf32>
    %171 = vector.multi_reduction <maximumf>, %170, %cst_110 [1] : vector<32x256xf32> to vector<32xf32>
    %172 = vector.shape_cast %171 : vector<32xf32> to vector<32x1xf32>
    %c0_i32_111 = arith.constant 0 : i32
    %c0_i32_112 = arith.constant 0 : i32
    %c0_i32_113 = arith.constant 0 : i32
    %c0_i32_114 = arith.constant 0 : i32
    %173 = tpu.memref_slice %arg16[%c0_i32_111, %c0_i32_112, %c0_i32_113, %c0_i32_114] : memref<1x1x32x8xf32, #tpu.memory_space<vmem>> -> memref<1x1x32x8xf32, #tpu.memory_space<vmem>>
    %174 = tpu.memref_squeeze %173 : memref<1x1x32x8xf32, #tpu.memory_space<vmem>> -> memref<32x8xf32, #tpu.memory_space<vmem>>
    %c0_115 = arith.constant 0 : index
    %c6 = arith.constant 6 : index
    %175 = vector.load %174[%c0_115, %c6] : memref<32x8xf32, #tpu.memory_space<vmem>>, vector<32x1xf32>
    %176 = arith.maximumf %175, %172 : vector<32x1xf32>
    %c0_i32_116 = arith.constant 0 : i32
    %c0_i32_117 = arith.constant 0 : i32
    %c0_i32_118 = arith.constant 0 : i32
    %c0_i32_119 = arith.constant 0 : i32
    %177 = tpu.memref_slice %arg16[%c0_i32_116, %c0_i32_117, %c0_i32_118, %c0_i32_119] : memref<1x1x32x8xf32, #tpu.memory_space<vmem>> -> memref<1x1x32x8xf32, #tpu.memory_space<vmem>>
    %178 = tpu.memref_squeeze %177 : memref<1x1x32x8xf32, #tpu.memory_space<vmem>> -> memref<32x8xf32, #tpu.memory_space<vmem>>
    %c0_120 = arith.constant 0 : index
    %c6_121 = arith.constant 6 : index
    %179 = vector.load %178[%c0_120, %c6_121] : memref<32x8xf32, #tpu.memory_space<vmem>>, vector<32x1xf32>
    tpu.vector_store %178[%c0_120, %c6_121], %176 {strides = array<i32>} : memref<32x8xf32, #tpu.memory_space<vmem>>, vector<32x1xf32>,
    %180 = vector.extract_strided_slice %69 {offsets = [7, 0], sizes = [1, 256], strides = [1, 1]} : vector<8x256xf32> to vector<1x256xf32>
    %181 = vector.broadcast %180 : vector<1x256xf32> to vector<32x256xf32>
    %182 = arith.mulf %95, %181 : vector<32x256xf32>
    %cst_122 = arith.constant dense<0xFF800000> : vector<32xf32>
    %183 = vector.multi_reduction <maximumf>, %182, %cst_122 [1] : vector<32x256xf32> to vector<32xf32>
    %184 = vector.shape_cast %183 : vector<32xf32> to vector<32x1xf32>
    %c0_i32_123 = arith.constant 0 : i32
    %c0_i32_124 = arith.constant 0 : i32
    %c0_i32_125 = arith.constant 0 : i32
    %c0_i32_126 = arith.constant 0 : i32
    %185 = tpu.memref_slice %arg16[%c0_i32_123, %c0_i32_124, %c0_i32_125, %c0_i32_126] : memref<1x1x32x8xf32, #tpu.memory_space<vmem>> -> memref<1x1x32x8xf32, #tpu.memory_space<vmem>>
    %186 = tpu.memref_squeeze %185 : memref<1x1x32x8xf32, #tpu.memory_space<vmem>> -> memref<32x8xf32, #tpu.memory_space<vmem>>
    %c0_127 = arith.constant 0 : index
    %c7 = arith.constant 7 : index
    %187 = vector.load %186[%c0_127, %c7] : memref<32x8xf32, #tpu.memory_space<vmem>>, vector<32x1xf32>
    %188 = arith.maximumf %187, %184 : vector<32x1xf32>
    %c0_i32_128 = arith.constant 0 : i32
    %c0_i32_129 = arith.constant 0 : i32
    %c0_i32_130 = arith.constant 0 : i32
    %c0_i32_131 = arith.constant 0 : i32
    %189 = tpu.memref_slice %arg16[%c0_i32_128, %c0_i32_129, %c0_i32_130, %c0_i32_131] : memref<1x1x32x8xf32, #tpu.memory_space<vmem>> -> memref<1x1x32x8xf32, #tpu.memory_space<vmem>>
    %190 = tpu.memref_squeeze %189 : memref<1x1x32x8xf32, #tpu.memory_space<vmem>> -> memref<32x8xf32, #tpu.memory_space<vmem>>
    %c0_132 = arith.constant 0 : index
    %c7_133 = arith.constant 7 : index
    %191 = vector.load %190[%c0_132, %c7_133] : memref<32x8xf32, #tpu.memory_space<vmem>>, vector<32x1xf32>
    tpu.vector_store %190[%c0_132, %c7_133], %188 {strides = array<i32>} : memref<32x8xf32, #tpu.memory_space<vmem>>, vector<32x1xf32>,
    return
  }
  func.func @transform_0(%arg0: i32, %arg1: i32, %arg2: i32) -> (i32, i32, i32) {
    %c3_i32 = arith.constant 3 : i32
    %0 = arith.muli %arg0, %c3_i32 : i32
    %1 = arith.addi %0, %arg2 : i32
    %c0_i32 = arith.constant 0 : i32
    %c0_i32_0 = arith.constant 0 : i32
    return %arg1, %c0_i32, %1 : i32, i32, i32
  }
  func.func @transform_1(%arg0: i32, %arg1: i32, %arg2: i32) -> (i32, i32, i32) {
    %c3_i32 = arith.constant 3 : i32
    %0 = arith.muli %arg0, %c3_i32 : i32
    %1 = arith.addi %0, %arg2 : i32
    %c0_i32 = arith.constant 0 : i32
    %c0_i32_0 = arith.constant 0 : i32
    return %arg1, %c0_i32, %1 : i32, i32, i32
  }
  func.func @transform_2(%arg0: i32, %arg1: i32, %arg2: i32) -> (i32, i32, i32) {
    %c0_i32 = arith.constant 0 : i32
    %c0_i32_0 = arith.constant 0 : i32
    %c0_i32_1 = arith.constant 0 : i32
    return %arg1, %c0_i32, %c0_i32_0 : i32, i32, i32
  }
  func.func @transform_3(%arg0: i32, %arg1: i32, %arg2: i32) -> (i32, i32, i32) {
    %c0_i32 = arith.constant 0 : i32
    %c0_i32_0 = arith.constant 0 : i32
    %c0_i32_1 = arith.constant 0 : i32
    return %arg1, %c0_i32, %c0_i32_0 : i32, i32, i32
  }
  func.func @transform_4(%arg0: i32, %arg1: i32, %arg2: i32) -> (i32, i32, i32) {
    %c0_i32 = arith.constant 0 : i32
    %c0_i32_0 = arith.constant 0 : i32
    %c0_i32_1 = arith.constant 0 : i32
    return %arg1, %c0_i32, %c0_i32_0 : i32, i32, i32
  }
  func.func @transform_5(%arg0: i32, %arg1: i32, %arg2: i32) -> (i32, i32, i32) {
    %c0_i32 = arith.constant 0 : i32
    %c0_i32_0 = arith.constant 0 : i32
    %c0_i32_1 = arith.constant 0 : i32
    return %arg1, %c0_i32, %c0_i32_0 : i32, i32, i32
  }
  func.func @transform_6(%arg0: i32, %arg1: i32, %arg2: i32) -> (i32, i32) {
    %c0_i32 = arith.constant 0 : i32
    %c0_i32_0 = arith.constant 0 : i32
    %c0_i32_1 = arith.constant 0 : i32
    return %c0_i32, %c0_i32_0 : i32, i32
  }
  func.func @transform_7(%arg0: i32, %arg1: i32, %arg2: i32) -> (i32, i32) {
    %c0_i32 = arith.constant 0 : i32
    %c0_i32_0 = arith.constant 0 : i32
    %c0_i32_1 = arith.constant 0 : i32
    return %c0_i32, %c0_i32_0 : i32, i32
  }
  func.func @transform_8(%arg0: i32, %arg1: i32, %arg2: i32) -> (i32, i32) {
    %c0_i32 = arith.constant 0 : i32
    %c0_i32_0 = arith.constant 0 : i32
    %c0_i32_1 = arith.constant 0 : i32
    return %c0_i32, %c0_i32_0 : i32, i32
  }
  func.func @transform_9(%arg0: i32, %arg1: i32, %arg2: i32) -> (i32, i32) {
    %c0_i32 = arith.constant 0 : i32
    %c0_i32_0 = arith.constant 0 : i32
    %c0_i32_1 = arith.constant 0 : i32
    return %c0_i32, %c0_i32_0 : i32, i32
  }
  func.func @transform_10(%arg0: i32, %arg1: i32, %arg2: i32) -> (i32, i32) {
    %c0_i32 = arith.constant 0 : i32
    %c0_i32_0 = arith.constant 0 : i32
    %c0_i32_1 = arith.constant 0 : i32
    return %c0_i32, %c0_i32_0 : i32, i32
  }
  func.func @transform_11(%arg0: i32, %arg1: i32, %arg2: i32) -> (i32, i32) {
    %c0_i32 = arith.constant 0 : i32
    %c0_i32_0 = arith.constant 0 : i32
    %c0_i32_1 = arith.constant 0 : i32
    return %c0_i32, %c0_i32_0 : i32, i32
  }
  func.func @transform_12(%arg0: i32, %arg1: i32, %arg2: i32) -> (i32, i32, i32) {
    %c3_i32 = arith.constant 3 : i32
    %0 = arith.muli %arg0, %c3_i32 : i32
    %1 = arith.addi %0, %arg2 : i32
    %c0_i32 = arith.constant 0 : i32
    %c0_i32_0 = arith.constant 0 : i32
    return %arg1, %c0_i32, %1 : i32, i32, i32
  }
  func.func @transform_13(%arg0: i32, %arg1: i32, %arg2: i32) -> (i32, i32, i32, i32) {
    %c0_i32 = arith.constant 0 : i32
    %c0_i32_0 = arith.constant 0 : i32
    %c0_i32_1 = arith.constant 0 : i32
    return %arg0, %arg1, %c0_i32, %c0_i32_0 : i32, i32, i32, i32
  }
}

</mosaic_0001>

<llo_original>
// kernel: tpu_custom_call.1
$region0: #{tpu_custom_call.1}
  #allocation0 [shape = 'u32[]', space=smem, size = 0x4, offset = 0x4, fixed_abs, tag = 'smem constant byte address 0x4 - core index']
  #allocation1 [shape = 'u32[144,128]{1,0:T(1,128)}', space=vmem, size = 0x12000, scoped, tag = 'internal scratch']
  %s0 = inlined_call_operand.vmem [shape: f32[2,3,768], index: 0, kind: input, shape index: {}]
  %s1 = inlined_call_operand.vmem [shape: bf16[2,32,768], index: 1, kind: input, shape index: {}]
  %s2 = inlined_call_operand.vmem [shape: f32[2,8,3], index: 2, kind: input, shape index: {}]
  %s3 = inlined_call_operand.vmem [shape: f32[2,8,1], index: 3, kind: input, shape index: {}]
  %s4 = inlined_call_operand.vmem [shape: f32[2,8,3], index: 4, kind: input, shape index: {}]
  %s5 = inlined_call_operand.vmem [shape: f32[2,8,3], index: 5, kind: input, shape index: {}]
  %s6 = inlined_call_operand.vmem [shape: bf16[32,32], index: 6, kind: input, shape index: {}]
  %s7 = inlined_call_operand.vmem [shape: f32[32,1], index: 7, kind: input, shape index: {}]
  %s8 = inlined_call_operand.vmem [shape: f32[32,1], index: 8, kind: input, shape index: {}]
  %s9 = inlined_call_operand.vmem [shape: bf16[32,32], index: 9, kind: input, shape index: {}]
  %s10 = inlined_call_operand.vmem [shape: f32[32,1], index: 10, kind: input, shape index: {}]
  %s11 = inlined_call_operand.vmem [shape: f32[32,1], index: 11, kind: input, shape index: {}]
  %s12 = inlined_call_operand.hbm [shape: f32[2,8,768], index: 12, kind: output, shape index: {0}]
  %s13 = inlined_call_operand.vmem [shape: f32[1,2,32,8], index: 13, kind: output, shape index: {1}]
  %14 = xla_tuple %s12, %s13
  %s15 = sld [smem:[#allocation0]]
  $region131: #{tpu_custom_call.1} parent=0
    _
  %s17 = ssub.s32 1, %s15
  %s18 = scalar_select 0, %s17, %s15
  $region1: #{tpu_custom_call.1} parent=0
    #allocation2 [shape = 'u8[32768]{0}', space=vmem, size = 0x8000, scoped, tag = 'input window, operand 1']
    #allocation3 [shape = 'u8[16384]{0}', space=vmem, size = 0x4000, scoped, tag = 'output window, operand 0']
    #allocation4 [shape = 's32[2]{0}', space=sflag, size = 0x8, scoped, tag = 'scoped memory for tpu_custom_call.1']
    %19 = vsyncpa [#allocation4], 0
    %s20 = scalar_lea.sflag [#allocation4], 1
    %21 = vsyncpa %s20, 0
    loop: start=0, step=1, limit=8
    $region2: #{tpu_custom_call.1} parent=1 // loop_pre_header
      _
    $region3: #{tpu_custom_call.1} parent=1 // loop_header
      %s23 = sphi 0, %s27
      %p24 = scmp.ge.s32.totalorder %s23, 8
      %s30 = sphi 0, %s49
      %s31 = sphi 0, %s45
      %s32 = sphi 0, %s41
      %s33 = sphi 0, %s30
      %s34 = sphi 0, %s31
      %s35 = sphi 0, %s32
      %s36 = sphi 0, %s33
      %s37 = sphi 0, %s34
      %s38 = sphi 0, %s35
      %s58 = sphi 0, %s60
      %s61 = sphi 0, %s58
      %s62 = sphi 0, %s61
      %s78 = sphi 0, %s62
      %s90 = sphi 0, %s92
      %s93 = sphi 0, %s90
      %s94 = sphi 0, %s93
      %s110 = sphi 0, %s94
      %s116 = sphi 0, %s118
      %s119 = sphi 0, %s116
      %s120 = sphi 0, %s119
      %s136 = sphi 0, %s120
      %s142 = sphi 0, %s144
      %s145 = sphi 0, %s142
      %s146 = sphi 0, %s145
      %s162 = sphi 0, %s146
      %s168 = sphi 0, %s170
      %s171 = sphi 0, %s168
      %s172 = sphi 0, %s171
      %s188 = sphi 0, %s172
      %s194 = sphi 0, %s196
      %s197 = sphi 0, %s194
      %s198 = sphi 0, %s197
      %s214 = sphi 0, %s198
      %s218 = sphi 0, %s218
      %s220 = sphi 0, %s218
      %s221 = sphi 0, %s220
      %s235 = sphi 0, %s221
      %s239 = sphi 0, %s239
      %s241 = sphi 0, %s239
      %s242 = sphi 0, %s241
      %s256 = sphi 0, %s242
      %s260 = sphi 0, %s260
      %s262 = sphi 0, %s260
      %s263 = sphi 0, %s262
      %s277 = sphi 0, %s263
      %s281 = sphi 0, %s281
      %s283 = sphi 0, %s281
      %s284 = sphi 0, %s283
      %s298 = sphi 0, %s284
      %s302 = sphi 0, %s302
      %s304 = sphi 0, %s302
      %s305 = sphi 0, %s304
      %s319 = sphi 0, %s305
      %s323 = sphi 0, %s323
      %s325 = sphi 0, %s323
      %s326 = sphi 0, %s325
      %s340 = sphi 0, %s326
      %s352 = sphi 0, %s354
      %s355 = sphi 0, %s352
      %s356 = sphi 0, %s355
      %s372 = sphi 0, %s356
      %s380 = sphi 0, %s382
      %s383 = sphi 0, %s380
      %s384 = sphi 0, %s383
      %s400 = sphi 0, %s384
    $region4: #{tpu_custom_call.1} parent=1 // loop_header_branch
      %26 = sbr.rel (%p24) target = $region8
    $region5: #{tpu_custom_call.1} parent=1 // loop_body
      %s28 = ssub.s32 %s23, 1
      %s29 = ssub.s32 %s23, 2
      %s39 = sadd.s32 1, %s32
      %p40 = scmp.ge.s32.totalorder %s39, 3
      %s41 = scalar_select %p40, 0, %s39
      %s42 = sadd.s32 1, %s31
      %s43 = scalar_select %p40, %s42, %s31
      %p44 = scmp.ge.s32.totalorder %s43, 2
      %s45 = scalar_select %p44, 0, %s43
      %s46 = sadd.s32 1, %s30
      %s47 = scalar_select %p44, %s46, %s30
      %p48 = scmp.ge.s32.totalorder %s47, 1
      %s49 = scalar_select %p48, 0, %s47
      %s50 = smul.u32 %s30, 3
      %s51 = sadd.s32 %s50, %s32
      %s52 = smul.u32 %s49, 3
      %s53 = sadd.s32 %s52, %s41
      %s54 = ssub.s32 %s31, %s45
      %s55 = ssub.s32 %s51, %s53
      %s56 = sor.u32 %s54, %s55
      %p57 = scmp.eq.s32.totalorder %s56, 0
      %s59 = sadd.s32 %s58, 1
      %s60 = scalar_select %p57, %s58, %s59
      %p63 = pneg %p57
      %p64 = scmp.eq.s32.totalorder %s23, 5
      %p65 = por %p63, %p64
      %p66 = scmp.ne.s32.totalorder %s58, %s61
      %p67 = scmp.eq.s32.totalorder %s23, 0
      %p68 = por %p66, %p67
      %p69 = scmp.ne.s32.totalorder %s58, %s61
      %p70 = scmp.eq.s32.totalorder %s28, 5
      %p71 = por %p69, %p70
      %p72 = scmp.ne.s32.totalorder %s61, %s62
      %p73 = scmp.eq.s32.totalorder %s28, 0
      %p74 = por %p72, %p73
      %p75 = scmp.ne.s32.totalorder %s61, %s62
      %p76 = scmp.eq.s32.totalorder %s29, 5
      %p77 = por %p75, %p76
      %p79 = scmp.ne.s32.totalorder %s62, %s78
      %p80 = scmp.eq.s32.totalorder %s29, 0
      %p81 = por %p79, %p80
      %s82 = smul.u32 %s30, 3
      %s83 = sadd.s32 %s82, %s32
      %s84 = smul.u32 %s49, 3
      %s85 = sadd.s32 %s84, %s41
      %s86 = ssub.s32 %s31, %s45
      %s87 = ssub.s32 %s83, %s85
      %s88 = sor.u32 %s86, %s87
      %p89 = scmp.eq.s32.totalorder %s88, 0
      %s91 = sadd.s32 %s90, 1
      %s92 = scalar_select %p89, %s90, %s91
      %p95 = pneg %p89
      %p96 = scmp.eq.s32.totalorder %s23, 5
      %p97 = por %p95, %p96
      %p98 = scmp.ne.s32.totalorder %s90, %s93
      %p99 = scmp.eq.s32.totalorder %s23, 0
      %p100 = por %p98, %p99
      %p101 = scmp.ne.s32.totalorder %s90, %s93
      %p102 = scmp.eq.s32.totalorder %s28, 5
      %p103 = por %p101, %p102
      %p104 = scmp.ne.s32.totalorder %s93, %s94
      %p105 = scmp.eq.s32.totalorder %s28, 0
      %p106 = por %p104, %p105
      %p107 = scmp.ne.s32.totalorder %s93, %s94
      %p108 = scmp.eq.s32.totalorder %s29, 5
      %p109 = por %p107, %p108
      %p111 = scmp.ne.s32.totalorder %s94, %s110
      %p112 = scmp.eq.s32.totalorder %s29, 0
      %p113 = por %p111, %p112
      %s114 = ssub.s32 %s31, %s45
      %p115 = scmp.eq.s32.totalorder %s114, 0
      %s117 = sadd.s32 %s116, 1
      %s118 = scalar_select %p115, %s116, %s117
      %p121 = pneg %p115
      %p122 = scmp.eq.s32.totalorder %s23, 5
      %p123 = por %p121, %p122
      %p124 = scmp.ne.s32.totalorder %s116, %s119
      %p125 = scmp.eq.s32.totalorder %s23, 0
      %p126 = por %p124, %p125
      %p127 = scmp.ne.s32.totalorder %s116, %s119
      %p128 = scmp.eq.s32.totalorder %s28, 5
      %p129 = por %p127, %p128
      %p130 = scmp.ne.s32.totalorder %s119, %s120
      %p131 = scmp.eq.s32.totalorder %s28, 0
      %p132 = por %p130, %p131
      %p133 = scmp.ne.s32.totalorder %s119, %s120
      %p134 = scmp.eq.s32.totalorder %s29, 5
      %p135 = por %p133, %p134
      %p137 = scmp.ne.s32.totalorder %s120, %s136
      %p138 = scmp.eq.s32.totalorder %s29, 0
      %p139 = por %p137, %p138
      %s140 = ssub.s32 %s31, %s45
      %p141 = scmp.eq.s32.totalorder %s140, 0
      %s143 = sadd.s32 %s142, 1
      %s144 = scalar_select %p141, %s142, %s143
      %p147 = pneg %p141
      %p148 = scmp.eq.s32.totalorder %s23, 5
      %p149 = por %p147, %p148
      %p150 = scmp.ne.s32.totalorder %s142, %s145
      %p151 = scmp.eq.s32.totalorder %s23, 0
      %p152 = por %p150, %p151
      %p153 = scmp.ne.s32.totalorder %s142, %s145
      %p154 = scmp.eq.s32.totalorder %s28, 5
      %p155 = por %p153, %p154
      %p156 = scmp.ne.s32.totalorder %s145, %s146
      %p157 = scmp.eq.s32.totalorder %s28, 0
      %p158 = por %p156, %p157
      %p159 = scmp.ne.s32.totalorder %s145, %s146
      %p160 = scmp.eq.s32.totalorder %s29, 5
      %p161 = por %p159, %p160
      %p163 = scmp.ne.s32.totalorder %s146, %s162
      %p164 = scmp.eq.s32.totalorder %s29, 0
      %p165 = por %p163, %p164
      %s166 = ssub.s32 %s31, %s45
      %p167 = scmp.eq.s32.totalorder %s166, 0
      %s169 = sadd.s32 %s168, 1
      %s170 = scalar_select %p167, %s168, %s169
      %p173 = pneg %p167
      %p174 = scmp.eq.s32.totalorder %s23, 5
      %p175 = por %p173, %p174
      %p176 = scmp.ne.s32.totalorder %s168, %s171
      %p177 = scmp.eq.s32.totalorder %s23, 0
      %p178 = por %p176, %p177
      %p179 = scmp.ne.s32.totalorder %s168, %s171
      %p180 = scmp.eq.s32.totalorder %s28, 5
      %p181 = por %p179, %p180
      %p182 = scmp.ne.s32.totalorder %s171, %s172
      %p183 = scmp.eq.s32.totalorder %s28, 0
      %p184 = por %p182, %p183
      %p185 = scmp.ne.s32.totalorder %s171, %s172
      %p186 = scmp.eq.s32.totalorder %s29, 5
      %p187 = por %p185, %p186
      %p189 = scmp.ne.s32.totalorder %s172, %s188
      %p190 = scmp.eq.s32.totalorder %s29, 0
      %p191 = por %p189, %p190
      %s192 = ssub.s32 %s31, %s45
      %p193 = scmp.eq.s32.totalorder %s192, 0
      %s195 = sadd.s32 %s194, 1
      %s196 = scalar_select %p193, %s194, %s195
      %p199 = pneg %p193
      %p200 = scmp.eq.s32.totalorder %s23, 5
      %p201 = por %p199, %p200
      %p202 = scmp.ne.s32.totalorder %s194, %s197
      %p203 = scmp.eq.s32.totalorder %s23, 0
      %p204 = por %p202, %p203
      %p205 = scmp.ne.s32.totalorder %s194, %s197
      %p206 = scmp.eq.s32.totalorder %s28, 5
      %p207 = por %p205, %p206
      %p208 = scmp.ne.s32.totalorder %s197, %s198
      %p209 = scmp.eq.s32.totalorder %s28, 0
      %p210 = por %p208, %p209
      %p211 = scmp.ne.s32.totalorder %s197, %s198
      %p212 = scmp.eq.s32.totalorder %s29, 5
      %p213 = por %p211, %p212
      %p215 = scmp.ne.s32.totalorder %s198, %s214
      %p216 = scmp.eq.s32.totalorder %s29, 0
      %p217 = por %p215, %p216
      %s219 = sadd.s32 %s218, 1
      %p222 = scmp.eq.s32.totalorder %s23, 5
      %p223 = scmp.ne.s32.totalorder %s218, %s220
      %p224 = scmp.eq.s32.totalorder %s23, 0
      %p225 = por %p223, %p224
      %p226 = scmp.ne.s32.totalorder %s218, %s220
      %p227 = scmp.eq.s32.totalorder %s28, 5
      %p228 = por %p226, %p227
      %p229 = scmp.ne.s32.totalorder %s220, %s221
      %p230 = scmp.eq.s32.totalorder %s28, 0
      %p231 = por %p229, %p230
      %p232 = scmp.ne.s32.totalorder %s220, %s221
      %p233 = scmp.eq.s32.totalorder %s29, 5
      %p234 = por %p232, %p233
      %p236 = scmp.ne.s32.totalorder %s221, %s235
      %p237 = scmp.eq.s32.totalorder %s29, 0
      %p238 = por %p236, %p237
      %s240 = sadd.s32 %s239, 1
      %p243 = scmp.eq.s32.totalorder %s23, 5
      %p244 = scmp.ne.s32.totalorder %s239, %s241
      %p245 = scmp.eq.s32.totalorder %s23, 0
      %p246 = por %p244, %p245
      %p247 = scmp.ne.s32.totalorder %s239, %s241
      %p248 = scmp.eq.s32.totalorder %s28, 5
      %p249 = por %p247, %p248
      %p250 = scmp.ne.s32.totalorder %s241, %s242
      %p251 = scmp.eq.s32.totalorder %s28, 0
      %p252 = por %p250, %p251
      %p253 = scmp.ne.s32.totalorder %s241, %s242
      %p254 = scmp.eq.s32.totalorder %s29, 5
      %p255 = por %p253, %p254
      %p257 = scmp.ne.s32.totalorder %s242, %s256
      %p258 = scmp.eq.s32.totalorder %s29, 0
      %p259 = por %p257, %p258
      %s261 = sadd.s32 %s260, 1
      %p264 = scmp.eq.s32.totalorder %s23, 5
      %p265 = scmp.ne.s32.totalorder %s260, %s262
      %p266 = scmp.eq.s32.totalorder %s23, 0
      %p267 = por %p265, %p266
      %p268 = scmp.ne.s32.totalorder %s260, %s262
      %p269 = scmp.eq.s32.totalorder %s28, 5
      %p270 = por %p268, %p269
      %p271 = scmp.ne.s32.totalorder %s262, %s263
      %p272 = scmp.eq.s32.totalorder %s28, 0
      %p273 = por %p271, %p272
      %p274 = scmp.ne.s32.totalorder %s262, %s263
      %p275 = scmp.eq.s32.totalorder %s29, 5
      %p276 = por %p274, %p275
      %p278 = scmp.ne.s32.totalorder %s263, %s277
      %p279 = scmp.eq.s32.totalorder %s29, 0
      %p280 = por %p278, %p279
      %s282 = sadd.s32 %s281, 1
      %p285 = scmp.eq.s32.totalorder %s23, 5
      %p286 = scmp.ne.s32.totalorder %s281, %s283
      %p287 = scmp.eq.s32.totalorder %s23, 0
      %p288 = por %p286, %p287
      %p289 = scmp.ne.s32.totalorder %s281, %s283
      %p290 = scmp.eq.s32.totalorder %s28, 5
      %p291 = por %p289, %p290
      %p292 = scmp.ne.s32.totalorder %s283, %s284
      %p293 = scmp.eq.s32.totalorder %s28, 0
      %p294 = por %p292, %p293
      %p295 = scmp.ne.s32.totalorder %s283, %s284
      %p296 = scmp.eq.s32.totalorder %s29, 5
      %p297 = por %p295, %p296
      %p299 = scmp.ne.s32.totalorder %s284, %s298
      %p300 = scmp.eq.s32.totalorder %s29, 0
      %p301 = por %p299, %p300
      %s303 = sadd.s32 %s302, 1
      %p306 = scmp.eq.s32.totalorder %s23, 5
      %p307 = scmp.ne.s32.totalorder %s302, %s304
      %p308 = scmp.eq.s32.totalorder %s23, 0
      %p309 = por %p307, %p308
      %p310 = scmp.ne.s32.totalorder %s302, %s304
      %p311 = scmp.eq.s32.totalorder %s28, 5
      %p312 = por %p310, %p311
      %p313 = scmp.ne.s32.totalorder %s304, %s305
      %p314 = scmp.eq.s32.totalorder %s28, 0
      %p315 = por %p313, %p314
      %p316 = scmp.ne.s32.totalorder %s304, %s305
      %p317 = scmp.eq.s32.totalorder %s29, 5
      %p318 = por %p316, %p317
      %p320 = scmp.ne.s32.totalorder %s305, %s319
      %p321 = scmp.eq.s32.totalorder %s29, 0
      %p322 = por %p320, %p321
      %s324 = sadd.s32 %s323, 1
      %p327 = scmp.eq.s32.totalorder %s23, 5
      %p328 = scmp.ne.s32.totalorder %s323, %s325
      %p329 = scmp.eq.s32.totalorder %s23, 0
      %p330 = por %p328, %p329
      %p331 = scmp.ne.s32.totalorder %s323, %s325
      %p332 = scmp.eq.s32.totalorder %s28, 5
      %p333 = por %p331, %p332
      %p334 = scmp.ne.s32.totalorder %s325, %s326
      %p335 = scmp.eq.s32.totalorder %s28, 0
      %p336 = por %p334, %p335
      %p337 = scmp.ne.s32.totalorder %s325, %s326
      %p338 = scmp.eq.s32.totalorder %s29, 5
      %p339 = por %p337, %p338
      %p341 = scmp.ne.s32.totalorder %s326, %s340
      %p342 = scmp.eq.s32.totalorder %s29, 0
      %p343 = por %p341, %p342
      %s344 = smul.u32 %s30, 3
      %s345 = sadd.s32 %s344, %s32
      %s346 = smul.u32 %s49, 3
      %s347 = sadd.s32 %s346, %s41
      %s348 = ssub.s32 %s31, %s45
      %s349 = ssub.s32 %s345, %s347
      %s350 = sor.u32 %s348, %s349
      %p351 = scmp.eq.s32.totalorder %s350, 0
      %s353 = sadd.s32 %s352, 1
      %s354 = scalar_select %p351, %s352, %s353
      %p357 = pneg %p351
      %p358 = scmp.eq.s32.totalorder %s23, 5
      %p359 = por %p357, %p358
      %p360 = scmp.ne.s32.totalorder %s352, %s355
      %p361 = scmp.eq.s32.totalorder %s23, 0
      %p362 = por %p360, %p361
      %p363 = scmp.ne.s32.totalorder %s352, %s355
      %p364 = scmp.eq.s32.totalorder %s28, 5
      %p365 = por %p363, %p364
      %p366 = scmp.ne.s32.totalorder %s355, %s356
      %p367 = scmp.eq.s32.totalorder %s28, 0
      %p368 = por %p366, %p367
      %p369 = scmp.ne.s32.totalorder %s355, %s356
      %p370 = scmp.eq.s32.totalorder %s29, 5
      %p371 = por %p369, %p370
      %p373 = scmp.ne.s32.totalorder %s356, %s372
      %p374 = scmp.eq.s32.totalorder %s29, 0
      %p375 = por %p373, %p374
      %s376 = ssub.s32 %s30, %s49
      %s377 = ssub.s32 %s31, %s45
      %s378 = sor.u32 %s376, %s377
      %p379 = scmp.eq.s32.totalorder %s378, 0
      %s381 = sadd.s32 %s380, 1
      %s382 = scalar_select %p379, %s380, %s381
      %p385 = pneg %p379
      %p386 = scmp.eq.s32.totalorder %s23, 5
      %p387 = por %p385, %p386
      %p388 = scmp.ne.s32.totalorder %s380, %s383
      %p389 = scmp.eq.s32.totalorder %s23, 0
      %p390 = por %p388, %p389
      %p391 = scmp.ne.s32.totalorder %s380, %s383
      %p392 = scmp.eq.s32.totalorder %s28, 5
      %p393 = por %p391, %p392
      %p394 = scmp.ne.s32.totalorder %s383, %s384
      %p395 = scmp.eq.s32.totalorder %s28, 0
      %p396 = por %p394, %p395
      %p397 = scmp.ne.s32.totalorder %s383, %s384
      %p398 = scmp.eq.s32.totalorder %s29, 5
      %p399 = por %p397, %p398
      %p401 = scmp.ne.s32.totalorder %s384, %s400
      %p402 = scmp.eq.s32.totalorder %s29, 0
      %p403 = por %p401, %p402
      %p404 = scmp.le.s32.totalorder 1, %s23
      %p405 = scmp.lt.s32.totalorder %s23, 7
      %p406 = pnand %p404, %p405
      %p407 = pneg %p406
      // Predicated region
      $region9: #{tpu_custom_call.1} parent=5 // pred_check
        _
      $region10: #{tpu_custom_call.1} parent=5 // pred_check_branch
        %409 = sbr.rel (%p406) target = $region12
      $region11: #{tpu_custom_call.1} parent=5 // pred_region
        %s410 = ssub.s32 %s23, 1
        // Predicated region
        $region13: #{tpu_custom_call.1} parent=11 // pred_check
          %p411 = pneg %p231
        $region14: #{tpu_custom_call.1} parent=11 // pred_check_branch
          %413 = sbr.rel (%p411) target = $region16
        $region15: #{tpu_custom_call.1} parent=11 // pred_region
          _
        $region16: #{tpu_custom_call.1} parent=11 // pred_fallthru
          _
        // Predicated region
        $region17: #{tpu_custom_call.1} parent=11 // pred_check
          %p414 = pneg %p252
        $region18: #{tpu_custom_call.1} parent=11 // pred_check_branch
          %416 = sbr.rel (%p414) target = $region20
        $region19: #{tpu_custom_call.1} parent=11 // pred_region
          _
        $region20: #{tpu_custom_call.1} parent=11 // pred_fallthru
          _
        // Predicated region
        $region21: #{tpu_custom_call.1} parent=11 // pred_check
          %p417 = pneg %p273
        $region22: #{tpu_custom_call.1} parent=11 // pred_check_branch
          %419 = sbr.rel (%p417) target = $region24
        $region23: #{tpu_custom_call.1} parent=11 // pred_region
          _
        $region24: #{tpu_custom_call.1} parent=11 // pred_fallthru
          _
        // Predicated region
        $region25: #{tpu_custom_call.1} parent=11 // pred_check
          %p420 = pneg %p294
        $region26: #{tpu_custom_call.1} parent=11 // pred_check_branch
          %422 = sbr.rel (%p420) target = $region28
        $region27: #{tpu_custom_call.1} parent=11 // pred_region
          _
        $region28: #{tpu_custom_call.1} parent=11 // pred_fallthru
          _
        // Predicated region
        $region29: #{tpu_custom_call.1} parent=11 // pred_check
          %p423 = pneg %p315
        $region30: #{tpu_custom_call.1} parent=11 // pred_check_branch
          %425 = sbr.rel (%p423) target = $region32
        $region31: #{tpu_custom_call.1} parent=11 // pred_region
          _
        $region32: #{tpu_custom_call.1} parent=11 // pred_fallthru
          _
        // Predicated region
        $region33: #{tpu_custom_call.1} parent=11 // pred_check
          %p426 = pneg %p336
        $region34: #{tpu_custom_call.1} parent=11 // pred_check_branch
          %428 = sbr.rel (%p426) target = $region36
        $region35: #{tpu_custom_call.1} parent=11 // pred_region
          _
        $region36: #{tpu_custom_call.1} parent=11 // pred_fallthru
          _
      $region12: #{tpu_custom_call.1} parent=5 // pred_fallthru
        _
      %p429 = scmp.lt.s32.totalorder %s23, 6
      // Predicated region
      $region37: #{tpu_custom_call.1} parent=5 // pred_check
        %p430 = pneg %p429
      $region38: #{tpu_custom_call.1} parent=5 // pred_check_branch
        %432 = sbr.rel (%p430) target = $region40
      $region39: #{tpu_custom_call.1} parent=5 // pred_region
        // Predicated region
        $region41: #{tpu_custom_call.1} parent=39 // pred_check
          %p433 = pneg %p68
        $region42: #{tpu_custom_call.1} parent=39 // pred_check_branch
          %435 = sbr.rel (%p433) target = $region44
        $region43: #{tpu_custom_call.1} parent=39 // pred_region
          %s436 = smul.u32 %s30, 3
          %s437 = sadd.s32 %s436, %s32
          %s438 = smul.u32 2, %s437
          %p439 = scmp.lt.s32.totalorder %s31, 1
          %s440 = scalar_select %p439, %s31, 1
          %p441 = scmp.lt.s32.totalorder %s438, 5
          %s442 = scalar_select %p441, %s438, 5
          %s443 = smul.addr %s440, 6
          %s444 = sadd.s32 %s442, %s443
          %s445 = smul.addr %s444, 4
          %s446 = scalar_lea.vmem %s0, %s445
          %s447 = smul.u32 %s30, 3
          %s448 = sadd.s32 %s447, %s32
          %s449 = smul.u32 2, %s448
        $region44: #{tpu_custom_call.1} parent=39 // pred_fallthru
          _
        // Predicated region
        $region45: #{tpu_custom_call.1} parent=39 // pred_check
          %p450 = pneg %p100
        $region46: #{tpu_custom_call.1} parent=39 // pred_check_branch
          %452 = sbr.rel (%p450) target = $region48
        $region47: #{tpu_custom_call.1} parent=39 // pred_region
          %s453 = sand.u32 %s90, 1
          %s454 = sand.u32 %s90, 1
          %s455 = smul.addr %s454, 32
          %s456 = scalar_lea.vmem [#allocation2], %s455
          %s457 = smul.u32 %s30, 3
          %s458 = sadd.s32 %s457, %s32
          %s459 = smul.u32 2, %s458
          %s460 = smul.addr %s31, 24
          %s461 = sadd.s32 %s459, %s460
          %s462 = smul.addr %s461, 4
          %s463 = scalar_lea.vmem %s1, %s462
          // Predicated region
          $region49: #{tpu_custom_call.1} parent=47 // pred_check
            _
          $region50: #{tpu_custom_call.1} parent=47 // pred_check_branch
            %465 = sbr.rel (0) target = $region52
          $region51: #{tpu_custom_call.1} parent=47 // pred_region
            // Predicated region
            $region53: #{tpu_custom_call.1} parent=51 // pred_check
              _
            $region54: #{tpu_custom_call.1} parent=51 // pred_check_branch
              %467 = sbr.rel (0) target = $region56
            $region55: #{tpu_custom_call.1} parent=51 // pred_region
              // Predicated region
              $region68: #{tpu_custom_call.1} parent=55 // pred_check
                _
              $region69: #{tpu_custom_call.1} parent=55 // pred_check_branch
                %488 = sbr.rel (0) target = $region71
              $region70: #{tpu_custom_call.1} parent=55 // pred_region
                loop: start=0, step=1, limit=1
                $region72: #{tpu_custom_call.1} parent=70 // loop_pre_header
                  _
                $region73: #{tpu_custom_call.1} parent=70 // loop_header
                  %s490 = sphi 0, %s494
                  %p491 = scmp.ge.s32.totalorder %s490, 1
                  %s495 = sphi %s463, %s463
                  %s496 = sphi %s456, %s456
                $region74: #{tpu_custom_call.1} parent=70 // loop_header_branch
                  %493 = sbr.rel (%p491) target = $region78
                $region75: #{tpu_custom_call.1} parent=70 // loop_body
                  %v497 = vld [vmem:[%s495] sm:$0xff]
                  %498 = vst [vmem:[%s496] sm:$0xff] %v497
                  %v499 = vld [vmem:[%s495 + $0x18] sm:$0xff]
                  %500 = vst [vmem:[%s496 + $0x8] sm:$0xff] %v499
                  %v501 = vld [vmem:[%s495 + $0x30] sm:$0xff]
                  %502 = vst [vmem:[%s496 + $0x10] sm:$0xff] %v501
                  %v503 = vld [vmem:[%s495 + $0x48] sm:$0xff]
                  %504 = vst [vmem:[%s496 + $0x18] sm:$0xff] %v503
                $region76: #{tpu_custom_call.1} parent=70 // loop_footer
                  %s494 = sadd.s32 1, %s490
                $region77: #{tpu_custom_call.1} parent=70 // loop_footer_branch
                  %489 = sbr.rel target = $region73
                $region78: #{tpu_custom_call.1} parent=70 // loop_exit
                  _
              $region71: #{tpu_custom_call.1} parent=55 // pred_fallthru
                _
              // Predicated region
              $region79: #{tpu_custom_call.1} parent=55 // pred_check
                _
              $region80: #{tpu_custom_call.1} parent=55 // pred_check_branch
                %506 = sbr.rel target = $region82
              $region81: #{tpu_custom_call.1} parent=55 // pred_region
                _
              $region82: #{tpu_custom_call.1} parent=55 // pred_fallthru
                _
            $region56: #{tpu_custom_call.1} parent=51 // pred_fallthru
              _
            // Predicated region
            $region57: #{tpu_custom_call.1} parent=51 // pred_check
              _
            $region58: #{tpu_custom_call.1} parent=51 // pred_check_branch
              %469 = sbr.rel target = $region60
            $region59: #{tpu_custom_call.1} parent=51 // pred_region
              loop: start=0, step=1, limit=1
              $region61: #{tpu_custom_call.1} parent=59 // loop_pre_header
                _
              $region62: #{tpu_custom_call.1} parent=59 // loop_header
                %s472 = sphi 0, %s476
                %p473 = scmp.ge.s32.totalorder %s472, 1
                %s477 = sphi %s463, %s463
                %s478 = sphi %s456, %s456
              $region63: #{tpu_custom_call.1} parent=59 // loop_header_branch
                %475 = sbr.rel (%p473) target = $region67
              $region64: #{tpu_custom_call.1} parent=59 // loop_body
                %v479 = vld [vmem:[%s477] sm:$0xff]
                %480 = vst [vmem:[%s478] sm:$0xff] %v479
                %v481 = vld [vmem:[%s477 + $0x18] sm:$0xff]
                %482 = vst [vmem:[%s478 + $0x8] sm:$0xff] %v481
                %v483 = vld [vmem:[%s477 + $0x30] sm:$0xff]
                %484 = vst [vmem:[%s478 + $0x10] sm:$0xff] %v483
                %v485 = vld [vmem:[%s477 + $0x48] sm:$0xff]
                %486 = vst [vmem:[%s478 + $0x18] sm:$0xff] %v485
              $region65: #{tpu_custom_call.1} parent=59 // loop_footer
                %s476 = sadd.s32 1, %s472
              $region66: #{tpu_custom_call.1} parent=59 // loop_footer_branch
                %471 = sbr.rel target = $region62
              $region67: #{tpu_custom_call.1} parent=59 // loop_exit
                _
            $region60: #{tpu_custom_call.1} parent=51 // pred_fallthru
              _
          $region52: #{tpu_custom_call.1} parent=47 // pred_fallthru
            _
          %507 = vnop
        $region48: #{tpu_custom_call.1} parent=39 // pred_fallthru
          _
        // Predicated region
        $region83: #{tpu_custom_call.1} parent=39 // pred_check
          %p508 = pneg %p126
        $region84: #{tpu_custom_call.1} parent=39 // pred_check_branch
          %510 = sbr.rel (%p508) target = $region86
        $region85: #{tpu_custom_call.1} parent=39 // pred_region
          %p511 = scmp.lt.s32.totalorder %s31, 1
          %s512 = scalar_select %p511, %s31, 1
          %s513 = smul.addr %s512, 8
          %s514 = scalar_lea.vmem %s2, %s513
        $region86: #{tpu_custom_call.1} parent=39 // pred_fallthru
          _
        // Predicated region
        $region87: #{tpu_custom_call.1} parent=39 // pred_check
          %p515 = pneg %p152
        $region88: #{tpu_custom_call.1} parent=39 // pred_check_branch
          %517 = sbr.rel (%p515) target = $region90
        $region89: #{tpu_custom_call.1} parent=39 // pred_region
          %p518 = scmp.lt.s32.totalorder %s31, 1
          %s519 = scalar_select %p518, %s31, 1
          %s520 = smul.addr %s519, 8
          %s521 = scalar_lea.vmem %s3, %s520
        $region90: #{tpu_custom_call.1} parent=39 // pred_fallthru
          _
        // Predicated region
        $region91: #{tpu_custom_call.1} parent=39 // pred_check
          %p522 = pneg %p178
        $region92: #{tpu_custom_call.1} parent=39 // pred_check_branch
          %524 = sbr.rel (%p522) target = $region94
        $region93: #{tpu_custom_call.1} parent=39 // pred_region
          %p525 = scmp.lt.s32.totalorder %s31, 1
          %s526 = scalar_select %p525, %s31, 1
          %s527 = smul.addr %s526, 8
          %s528 = scalar_lea.vmem %s4, %s527
        $region94: #{tpu_custom_call.1} parent=39 // pred_fallthru
          _
        // Predicated region
        $region95: #{tpu_custom_call.1} parent=39 // pred_check
          %p529 = pneg %p204
        $region96: #{tpu_custom_call.1} parent=39 // pred_check_branch
          %531 = sbr.rel (%p529) target = $region98
        $region97: #{tpu_custom_call.1} parent=39 // pred_region
          %p532 = scmp.lt.s32.totalorder %s31, 1
          %s533 = scalar_select %p532, %s31, 1
          %s534 = smul.addr %s533, 8
          %s535 = scalar_lea.vmem %s5, %s534
        $region98: #{tpu_custom_call.1} parent=39 // pred_fallthru
          _
      $region40: #{tpu_custom_call.1} parent=5 // pred_fallthru
        _
      %p536 = scmp.le.s32.totalorder 1, %s23
      %p537 = scmp.lt.s32.totalorder %s23, 7
      %p538 = pnand %p536, %p537
      %p539 = pneg %p538
      // Predicated region
      $region99: #{tpu_custom_call.1} parent=5 // pred_check
        _
      $region100: #{tpu_custom_call.1} parent=5 // pred_check_branch
        %541 = sbr.rel (%p538) target = $region102
      $region101: #{tpu_custom_call.1} parent=5 // pred_region
        %s542 = ssub.s32 %s23, 1
        %s543 = sand.u32 %s93, 1
        %s544 = sand.u32 %s93, 1
        %s545 = smul.addr %s544, 32
        %s546 = scalar_lea.vmem [#allocation2], %s545
        // Predicated region
        $region103: #{tpu_custom_call.1} parent=101 // pred_check
          %p547 = pneg %p106
        $region104: #{tpu_custom_call.1} parent=101 // pred_check_branch
          %549 = sbr.rel (%p547) target = $region106
        $region105: #{tpu_custom_call.1} parent=101 // pred_region
          _
        $region106: #{tpu_custom_call.1} parent=101 // pred_fallthru
          _
        %s550 = smul.u32 %s33, 3
        %s551 = sadd.s32 %s550, %s35
        %s552 = smul.u32 2, %s551
        %p553 = scmp.lt.s32.totalorder %s34, 1
        %s554 = scalar_select %p553, %s34, 1
        %p555 = scmp.lt.s32.totalorder %s552, 5
        %s556 = scalar_select %p555, %s552, 5
        %s557 = smul.addr %s554, 6
        %s558 = sadd.s32 %s556, %s557
        %s559 = smul.addr %s558, 4
        %s560 = scalar_lea.vmem %s0, %s559
        %p561 = pneg %p74
        %p562 = pneg %p71
        %s563 = sand.u32 %s93, 1
        %s564 = sand.u32 %s93, 1
        %s565 = smul.addr %s564, 32
        %s566 = scalar_lea.vmem [#allocation2], %s565
        %p567 = pneg %p106
        %p568 = pneg %p103
        %p569 = scmp.lt.s32.totalorder %s34, 1
        %s570 = scalar_select %p569, %s34, 1
        %s571 = smul.addr %s570, 8
        %s572 = scalar_lea.vmem %s2, %s571
        %p573 = pneg %p132
        %p574 = pneg %p129
        %p575 = scmp.lt.s32.totalorder %s34, 1
        %s576 = scalar_select %p575, %s34, 1
        %s577 = smul.addr %s576, 8
        %s578 = scalar_lea.vmem %s3, %s577
        %p579 = pneg %p158
        %p580 = pneg %p155
        %p581 = scmp.lt.s32.totalorder %s34, 1
        %s582 = scalar_select %p581, %s34, 1
        %s583 = smul.addr %s582, 8
        %s584 = scalar_lea.vmem %s4, %s583
        %p585 = pneg %p184
        %p586 = pneg %p181
        %p587 = scmp.lt.s32.totalorder %s34, 1
        %s588 = scalar_select %p587, %s34, 1
        %s589 = smul.addr %s588, 8
        %s590 = scalar_lea.vmem %s5, %s589
        %p591 = pneg %p210
        %p592 = pneg %p207
        %p593 = pneg %p231
        %p594 = pneg %p228
        %p595 = pneg %p252
        %p596 = pneg %p249
        %p597 = pneg %p273
        %p598 = pneg %p270
        %p599 = pneg %p294
        %p600 = pneg %p291
        %p601 = pneg %p315
        %p602 = pneg %p312
        %p603 = pneg %p336
        %p604 = pneg %p333
        %p605 = pneg %p368
        %p606 = pneg %p365
        %s607 = sand.u32 %s355, 1
        %s608 = scalar_lea.sflag [#allocation4], %s607
        %s609 = sand.u32 %s355, 1
        %s610 = smul.addr %s609, 16
        %s611 = scalar_lea.vmem [#allocation3], %s610
        %p612 = pneg %p396
        %p613 = pneg %p393
        %p614 = scmp.lt.s32.totalorder %s33, 0
        %s615 = scalar_select %p614, %s33, 0
        %p616 = scmp.lt.s32.totalorder %s34, 1
        %s617 = scalar_select %p616, %s34, 1
        %s618 = smul.addr %s617, 4
        %s619 = smul.addr %s615, 8
        %s620 = sadd.s32 %s618, %s619
        %s621 = smul.addr %s620, 8
        %s622 = scalar_lea.vmem %s13, %s621
        %s623 = smul.u32 %s33, 3
        %s624 = sadd.s32 %s623, %s35
        %s625 = smul.u32 2, %s624
        %p626 = scmp.lt.s32.totalorder %s34, 1
        %s627 = scalar_select %p626, %s34, 1
        %p628 = scmp.lt.s32.totalorder %s625, 5
        %s629 = scalar_select %p628, %s625, 5
        %s630 = smul.addr %s627, 6
        %s631 = sadd.s32 %s629, %s630
        %s632 = smul.addr %s631, 4
        %s633 = scalar_lea.vmem %s0, %s632
        %s634 = smul.u32 %s33, 3
        %s635 = sadd.s32 %s634, %s35
        %s636 = smul.u32 2, %s635
        %s637 = smul.u32 %s33, 3
        %s638 = sadd.s32 %s637, %s35
        %s639 = smul.u32 2, %s638
        %p640 = scmp.lt.s32.totalorder %s34, 1
        %s641 = scalar_select %p640, %s34, 1
        %s642 = smul.addr %s641, 8
        %s643 = scalar_lea.vmem %s2, %s642
        %p644 = scmp.lt.s32.totalorder %s34, 1
        %s645 = scalar_select %p644, %s34, 1
        %s646 = smul.addr %s645, 8
        %s647 = scalar_lea.vmem %s3, %s646
        %p648 = scmp.lt.s32.totalorder %s34, 1
        %s649 = scalar_select %p648, %s34, 1
        %s650 = smul.addr %s649, 8
        %s651 = scalar_lea.vmem %s4, %s650
        %p652 = scmp.lt.s32.totalorder %s34, 1
        %s653 = scalar_select %p652, %s34, 1
        %s654 = smul.addr %s653, 8
        %s655 = scalar_lea.vmem %s5, %s654
        %s656 = smul.u32 %s33, 3
        %s657 = sadd.s32 %s656, %s35
        %s658 = smul.u32 2, %s657
        %p659 = scmp.lt.s32.totalorder %s33, 0
        %s660 = scalar_select %p659, %s33, 0
        %p661 = scmp.lt.s32.totalorder %s34, 1
        %s662 = scalar_select %p661, %s34, 1
        %s663 = smul.addr %s662, 4
        %s664 = smul.addr %s660, 8
        %s665 = sadd.s32 %s663, %s664
        %s666 = smul.addr %s665, 8
        %s667 = scalar_lea.vmem %s13, %s666
        %p669 = scmp.eq.s32.totalorder %s35, 0
        // Predicated region
        $region107: #{tpu_custom_call.1} parent=101 // pred_check
          %p670 = pneg %p669
        $region108: #{tpu_custom_call.1} parent=101 // pred_check_branch
          %672 = sbr.rel (%p670) target = $region110
        $region109: #{tpu_custom_call.1} parent=101 // pred_region
          %vm673 = vcmask 64512
          %674 = vst.msk [vmem:[%s667] sm:$0xff] %vm673, 0.0
          %675 = vst.msk [vmem:[%s667 + $0x8] sm:$0xff] %vm673, 0.0
          %676 = vst.msk [vmem:[%s667 + $0x10] sm:$0xff] %vm673, 0.0
          %677 = vst.msk [vmem:[%s667 + $0x18] sm:$0xff] %vm673, 0.0
        $region110: #{tpu_custom_call.1} parent=101 // pred_fallthru
          _
        %v678 = vld [vmem:[%s633] sm:$0x77]
        %v679 = vld [vmem:[%s643] sm:$0xff]
        %v680 = vld [vmem:[%s651] sm:$0xff]
        %v681 = vld [vmem:[%s655] sm:$0xff]
        %683 = vset.pattern.permute.xlu0 0
        %684 = vperm.xlu0 %683, %v679
        %v685 = vpop.permute.xlu0 %684
        %v688 = vlaneseq
        %v689 = vshrl.u32 %v688, 7
        %v690 = vsub.s32 0, %v689
        %v691 = vrot.slane %v678, %v690
        %v692 = vlaneseq
        %v693 = vshrl.u32 %v692, 7
        %v694 = vsub.s32 4, %v693
        %v695 = vrot.slane %v678, %v694
        %v698 = vlaneseq
        %v699 = vshrl.u32 %v698, 7
        %v700 = vsub.s32 0, %v699
        %v701 = vrot.slane %v691, %v700
        %v702 = vlaneseq
        %v703 = vshrl.u32 %v702, 7
        %v704 = vsub.s32 0, %v703
        %v705 = vrot.slane %v695, %v704
        %v706 = vmul.f32 %v685, %v701
        %v707 = vmul.f32 %v685, %v705
        %708 = vset.pattern.permute.xlu0 1
        %709 = vperm.xlu0 %708, %v679
        %v710 = vpop.permute.xlu0 %709
        %v712 = vlaneseq
        %v713 = vshrl.u32 %v712, 7
        %v714 = vsub.s32 1, %v713
        %v715 = vrot.slane %v678, %v714
        %v716 = vlaneseq
        %v717 = vshrl.u32 %v716, 7
        %v718 = vsub.s32 5, %v717
        %v719 = vrot.slane %v678, %v718
        %v722 = vlaneseq
        %v723 = vshrl.u32 %v722, 7
        %v724 = vsub.s32 1, %v723
        %v725 = vrot.slane %v715, %v724
        %v726 = vlaneseq
        %v727 = vshrl.u32 %v726, 7
        %v728 = vsub.s32 1, %v727
        %v729 = vrot.slane %v719, %v728
        %v730 = vmul.f32 %v710, %v725
        %v731 = vmul.f32 %v710, %v729
        %v732 = vadd.f32 %v706, %v730
        %v733 = vadd.f32 %v707, %v731
        %734 = vset.pattern.permute.xlu0 2
        %735 = vperm.xlu0 %734, %v679
        %v736 = vpop.permute.xlu0 %735
        %v738 = vlaneseq
        %v739 = vshrl.u32 %v738, 7
        %v740 = vsub.s32 2, %v739
        %v741 = vrot.slane %v678, %v740
        %v742 = vlaneseq
        %v743 = vshrl.u32 %v742, 7
        %v744 = vsub.s32 6, %v743
        %v745 = vrot.slane %v678, %v744
        %v748 = vlaneseq
        %v749 = vshrl.u32 %v748, 7
        %v750 = vsub.s32 2, %v749
        %v751 = vrot.slane %v741, %v750
        %v752 = vlaneseq
        %v753 = vshrl.u32 %v752, 7
        %v754 = vsub.s32 2, %v753
        %v755 = vrot.slane %v745, %v754
        %v756 = vmul.f32 %v736, %v751
        %v757 = vmul.f32 %v736, %v755
        %v758 = vadd.f32 %v732, %v756
        %v759 = vadd.f32 %v733, %v757
        %v760 = vld [vmem:[%s647] sm:$0xff]
        %762 = vset.pattern.permute.xlu0 0
        %763 = vperm.xlu0 %762, %v760
        %v764 = vpop.permute.xlu0 %763
        %v766 = vsub.f32 %v758, %v764
        %v767 = vsub.f32 %v759, %v764
        %v768 = vand.u32 2147483647, %v766
        %v769 = vand.u32 2147483647, %v767
        %vm770 = vcmp.lt.f32.partialorder %v768, 0.05
        %vm771 = vcmp.lt.f32.partialorder %v769, 0.05
        %773 = vset.pattern.permute.xlu0 0
        %774 = vperm.xlu0 %773, %v680
        %v775 = vpop.permute.xlu0 %774
        %vm777 = vcmp.ge.f32.partialorder %v701, %v775
        %vm778 = vcmp.ge.f32.partialorder %v705, %v775
        %vm779 = vmand %vm770, %vm777
        %vm780 = vmand %vm771, %vm778
        %782 = vset.pattern.permute.xlu0 0
        %783 = vperm.xlu0 %782, %v681
        %v784 = vpop.permute.xlu0 %783
        %vm786 = vcmp.lt.f32.partialorder %v701, %v784
        %vm787 = vcmp.lt.f32.partialorder %v705, %v784
        %vm788 = vmand %vm779, %vm786
        %vm789 = vmand %vm780, %vm787
        %790 = vset.pattern.permute.xlu0 1
        %791 = vperm.xlu0 %790, %v680
        %v792 = vpop.permute.xlu0 %791
        %vm794 = vcmp.ge.f32.partialorder %v725, %v792
        %vm795 = vcmp.ge.f32.partialorder %v729, %v792
        %vm796 = vmand %vm788, %vm794
        %vm797 = vmand %vm789, %vm795
        %798 = vset.pattern.permute.xlu0 1
        %799 = vperm.xlu0 %798, %v681
        %v800 = vpop.permute.xlu0 %799
        %vm802 = vcmp.lt.f32.partialorder %v725, %v800
        %vm803 = vcmp.lt.f32.partialorder %v729, %v800
        %vm804 = vmand %vm796, %vm802
        %vm805 = vmand %vm797, %vm803
        %806 = vset.pattern.permute.xlu0 2
        %807 = vperm.xlu0 %806, %v680
        %v808 = vpop.permute.xlu0 %807
        %vm810 = vcmp.ge.f32.partialorder %v751, %v808
        %vm811 = vcmp.ge.f32.partialorder %v755, %v808
        %vm812 = vmand %vm804, %vm810
        %vm813 = vmand %vm805, %vm811
        %814 = vset.pattern.permute.xlu0 2
        %815 = vperm.xlu0 %814, %v681
        %v816 = vpop.permute.xlu0 %815
        %vm818 = vcmp.lt.f32.partialorder %v751, %v816
        %vm819 = vcmp.lt.f32.partialorder %v755, %v816
        %vm820 = vmand %vm812, %vm818
        %vm821 = vmand %vm813, %vm819
        %v822 = vsel %vm820, 1, 0
        %v823 = vsel %vm821, 1, 0
        %v824 = vcvt.s32.f32 %v822
        %v825 = vcvt.s32.f32 %v823
        %826 = vst [vmem:[%s611] sm:$0xff] %v824
        %827 = vst [vmem:[%s611 + $0x8] sm:$0xff] %v825
        %v828 = vld [vmem:[%s546] sm:$0xff]
        %v829 = vld [vmem:[%s546 + $0x8] sm:$0xff]
        %v830 = vld [vmem:[%s546 + $0x10] sm:$0xff]
        %v831 = vld [vmem:[%s546 + $0x18] sm:$0xff]
        %v832 = vld [vmem:[%s6] sm:$0xf]
        %v833 = vld [vmem:[%s6 + $0x4] sm:$0xf]
        %v834 = vld [vmem:[%s6 + $0x8] sm:$0xf]
        %v835 = vld [vmem:[%s6 + $0xc] sm:$0xf]
        %v840 = vunpack.c.l.b16 %v832
        %v841 = vunpack.c.l.b16 %v833
        %v842 = vunpack.c.l.b16 %v834
        %v843 = vunpack.c.l.b16 %v835
        %v844 = vpack.c.b16 %v841, %v840
        %v845 = vpack.c.b16 %v843, %v842
        %v850 = vunpack.c.l.b16 %v828
        %v851 = vunpack.c.h.b16 %v828
        %v852 = vunpack.c.l.b16 %v829
        %v853 = vunpack.c.h.b16 %v829
        %v854 = vunpack.c.l.b16 %v830
        %v855 = vunpack.c.h.b16 %v830
        %v856 = vunpack.c.l.b16 %v831
        %v857 = vunpack.c.h.b16 %v831
        %v858 = vpack.c.b16 %v852, %v850
        %v859 = vpack.c.b16 %v853, %v851
        %v860 = vpack.c.b16 %v856, %v854
        %v861 = vpack.c.b16 %v857, %v855
        %vm866 = vcmask 261120
        %v868 = vsel %vm866, %v844, 0
        %v871 = vsel %vm866, %v845, 0
        %873 = vmatprep.subr.bf16.mxu0 %v859
        %874 = vmatpush1.bf16.msra.mxu0 %v858
        %875 = vmatprep.subr.bf16.mxu0 %v861
        %876 = vmatpush1.bf16.msra.mxu0 %v860
        %877 = vmatprep.subr.bf16.mxu0 0
        %878 = vmatpush1.bf16.msra.mxu0 0
        %879 = vmatprep.subr.bf16.mxu0 0
        %880 = vmatpush1.bf16.msra.mxu0 0
        %881 = vmatprep.subr.bf16.mxu0 0
        %882 = vmatpush1.bf16.msra.mxu0 0
        %883 = vmatprep.subr.bf16.mxu0 0
        %884 = vmatpush1.bf16.msra.mxu0 0
        %885 = vmatprep.subr.bf16.mxu0 0
        %886 = vmatpush1.bf16.msra.mxu0 0
        %887 = vmatprep.subr.bf16.mxu0 0
        %888 = vmatpush1.bf16.msra.mxu0 0
        %889 = vmatprep.subr.bf16.mxu0 0
        %890 = vmatpush1.bf16.msra.mxu0 0
        %891 = vmatprep.subr.bf16.mxu0 0
        %892 = vmatpush1.bf16.msra.mxu0 0
        %893 = vmatprep.subr.bf16.mxu0 0
        %894 = vmatpush1.bf16.msra.mxu0 0
        %895 = vmatprep.subr.bf16.mxu0 0
        %896 = vmatpush1.bf16.msra.mxu0 0
        %897 = vmatprep.subr.bf16.mxu0 0
        %898 = vmatpush1.bf16.msra.mxu0 0
        %899 = vmatprep.subr.bf16.mxu0 0
        %900 = vmatpush1.bf16.msra.mxu0 0
        %901 = vmatprep.subr.bf16.mxu0 0
        %902 = vmatpush1.bf16.msra.mxu0 0
        %903 = vmatprep.subr.bf16.mxu0 0
        %904 = vmatpush1.bf16.msra.mxu0 0
        %905 = vmatprep.mubr.bf16.mxu0 0
        %906 = vmatmul.mubr.bf16.gmra.mrb[0].mxu0 %v868
        %v907 = vpop.f32.mrb[0].mxu0
        %v908 = vadd.f32 0.0, %v907
        %v909 = vpop.f32.mrb[0].mxu0
        %v910 = vadd.f32 0.0, %v909
        %v911 = vpop.f32.mrb[0].mxu0
        %v912 = vadd.f32 0.0, %v911
        %v913 = vpop.f32.mrb[0].mxu0
        %v914 = vadd.f32 0.0, %v913
        %915 = vmatprep.mubr.bf16.mxu0 0
        %916 = vmatmul.mubr.bf16.gmra.mrb[0].mxu0 %v871
        %v917 = vpop.f32.mrb[0].mxu0
        %v918 = vadd.f32 0.0, %v917
        %v919 = vpop.f32.mrb[0].mxu0
        %v920 = vadd.f32 0.0, %v919
        %v921 = vpop.f32.mrb[0].mxu0
        %v922 = vadd.f32 0.0, %v921
        %v923 = vpop.f32.mrb[0].mxu0
        %v924 = vadd.f32 0.0, %v923
        %925 = vdwg.mxu0
        %v926 = vld [vmem:[%s7] sm:$0xff]
        %v927 = vld [vmem:[%s7 + $0x8] sm:$0xff]
        %v928 = vld [vmem:[%s7 + $0x10] sm:$0xff]
        %v929 = vld [vmem:[%s7 + $0x18] sm:$0xff]
        %931 = vset.pattern.permute.xlu0 0
        %932 = vperm.xlu0 %931, %v926
        %v933 = vpop.permute.xlu0 %932
        %936 = vset.pattern.permute.xlu0 0
        %937 = vperm.xlu0 %936, %v927
        %v938 = vpop.permute.xlu0 %937
        %941 = vset.pattern.permute.xlu0 0
        %942 = vperm.xlu0 %941, %v928
        %v943 = vpop.permute.xlu0 %942
        %946 = vset.pattern.permute.xlu0 0
        %947 = vperm.xlu0 %946, %v929
        %v948 = vpop.permute.xlu0 %947
        %v950 = vmul.f32 %v908, %v933
        %v951 = vmul.f32 %v910, %v933
        %v952 = vmul.f32 %v912, %v938
        %v953 = vmul.f32 %v914, %v938
        %v954 = vmul.f32 %v918, %v943
        %v955 = vmul.f32 %v920, %v943
        %v956 = vmul.f32 %v922, %v948
        %v957 = vmul.f32 %v924, %v948
        %v958 = vld [vmem:[%s8] sm:$0xff]
        %v959 = vld [vmem:[%s8 + $0x8] sm:$0xff]
        %v960 = vld [vmem:[%s8 + $0x10] sm:$0xff]
        %v961 = vld [vmem:[%s8 + $0x18] sm:$0xff]
        %963 = vset.pattern.permute.xlu0 0
        %964 = vperm.xlu0 %963, %v958
        %v965 = vpop.permute.xlu0 %964
        %968 = vset.pattern.permute.xlu0 0
        %969 = vperm.xlu0 %968, %v959
        %v970 = vpop.permute.xlu0 %969
        %973 = vset.pattern.permute.xlu0 0
        %974 = vperm.xlu0 %973, %v960
        %v975 = vpop.permute.xlu0 %974
        %978 = vset.pattern.permute.xlu0 0
        %979 = vperm.xlu0 %978, %v961
        %v980 = vpop.permute.xlu0 %979
        %v982 = vadd.f32 %v950, %v965
        %v983 = vadd.f32 %v951, %v965
        %v984 = vadd.f32 %v952, %v970
        %v985 = vadd.f32 %v953, %v970
        %v986 = vadd.f32 %v954, %v975
        %v987 = vadd.f32 %v955, %v975
        %v988 = vadd.f32 %v956, %v980
        %v989 = vadd.f32 %v957, %v980
        %v990 = vmax.f32 %v982, 0.0
        %v991 = vmax.f32 %v983, 0.0
        %v992 = vmax.f32 %v984, 0.0
        %v993 = vmax.f32 %v985, 0.0
        %v994 = vmax.f32 %v986, 0.0
        %v995 = vmax.f32 %v987, 0.0
        %v996 = vmax.f32 %v988, 0.0
        %v997 = vmax.f32 %v989, 0.0
        %v998 = vld [vmem:[%s9] sm:$0xf]
        %v999 = vld [vmem:[%s9 + $0x4] sm:$0xf]
        %v1000 = vld [vmem:[%s9 + $0x8] sm:$0xf]
        %v1001 = vld [vmem:[%s9 + $0xc] sm:$0xf]
        %v1002 = vpack.c.bf16 %v992, %v990
        %v1003 = vpack.c.bf16 %v993, %v991
        %v1004 = vpack.c.bf16 %v996, %v994
        %v1005 = vpack.c.bf16 %v997, %v995
        %v1010 = vunpack.c.l.b16 %v998
        %v1011 = vunpack.c.l.b16 %v999
        %v1012 = vunpack.c.l.b16 %v1000
        %v1013 = vunpack.c.l.b16 %v1001
        %v1014 = vpack.c.b16 %v1011, %v1010
        %v1015 = vpack.c.b16 %v1013, %v1012
        %v1017 = vsel %vm866, %v1014, 0
        %v1020 = vsel %vm866, %v1015, 0
        %1022 = vmatprep.subr.bf16.mxu0 %v1003
        %1023 = vmatpush1.bf16.msra.mxu0 %v1002
        %1024 = vmatprep.subr.bf16.mxu0 %v1005
        %1025 = vmatpush1.bf16.msra.mxu0 %v1004
        %1026 = vmatprep.subr.bf16.mxu0 0
        %1027 = vmatpush1.bf16.msra.mxu0 0
        %1028 = vmatprep.subr.bf16.mxu0 0
        %1029 = vmatpush1.bf16.msra.mxu0 0
        %1030 = vmatprep.subr.bf16.mxu0 0
        %1031 = vmatpush1.bf16.msra.mxu0 0
        %1032 = vmatprep.subr.bf16.mxu0 0
        %1033 = vmatpush1.bf16.msra.mxu0 0
        %1034 = vmatprep.subr.bf16.mxu0 0
        %1035 = vmatpush1.bf16.msra.mxu0 0
        %1036 = vmatprep.subr.bf16.mxu0 0
        %1037 = vmatpush1.bf16.msra.mxu0 0
        %1038 = vmatprep.subr.bf16.mxu0 0
        %1039 = vmatpush1.bf16.msra.mxu0 0
        %1040 = vmatprep.subr.bf16.mxu0 0
        %1041 = vmatpush1.bf16.msra.mxu0 0
        %1042 = vmatprep.subr.bf16.mxu0 0
        %1043 = vmatpush1.bf16.msra.mxu0 0
        %1044 = vmatprep.subr.bf16.mxu0 0
        %1045 = vmatpush1.bf16.msra.mxu0 0
        %1046 = vmatprep.subr.bf16.mxu0 0
        %1047 = vmatpush1.bf16.msra.mxu0 0
        %1048 = vmatprep.subr.bf16.mxu0 0
        %1049 = vmatpush1.bf16.msra.mxu0 0
        %1050 = vmatprep.subr.bf16.mxu0 0
        %1051 = vmatpush1.bf16.msra.mxu0 0
        %1052 = vmatprep.subr.bf16.mxu0 0
        %1053 = vmatpush1.bf16.msra.mxu0 0
        %1054 = vmatprep.mubr.bf16.mxu0 0
        %1055 = vmatmul.mubr.bf16.gmra.mrb[0].mxu0 %v1017
        %v1056 = vpop.f32.mrb[0].mxu0
        %v1057 = vadd.f32 0.0, %v1056
        %v1058 = vpop.f32.mrb[0].mxu0
        %v1059 = vadd.f32 0.0, %v1058
        %v1060 = vpop.f32.mrb[0].mxu0
        %v1061 = vadd.f32 0.0, %v1060
        %v1062 = vpop.f32.mrb[0].mxu0
        %v1063 = vadd.f32 0.0, %v1062
        %1064 = vmatprep.mubr.bf16.mxu0 0
        %1065 = vmatmul.mubr.bf16.gmra.mrb[0].mxu0 %v1020
        %v1066 = vpop.f32.mrb[0].mxu0
        %v1067 = vadd.f32 0.0, %v1066
        %v1068 = vpop.f32.mrb[0].mxu0
        %v1069 = vadd.f32 0.0, %v1068
        %v1070 = vpop.f32.mrb[0].mxu0
        %v1071 = vadd.f32 0.0, %v1070
        %v1072 = vpop.f32.mrb[0].mxu0
        %v1073 = vadd.f32 0.0, %v1072
        %1074 = vdwg.mxu0
        %v1075 = vld [vmem:[%s10] sm:$0xff]
        %v1076 = vld [vmem:[%s10 + $0x8] sm:$0xff]
        %v1077 = vld [vmem:[%s10 + $0x10] sm:$0xff]
        %v1078 = vld [vmem:[%s10 + $0x18] sm:$0xff]
        %1080 = vset.pattern.permute.xlu0 0
        %1081 = vperm.xlu0 %1080, %v1075
        %v1082 = vpop.permute.xlu0 %1081
        %1085 = vset.pattern.permute.xlu0 0
        %1086 = vperm.xlu0 %1085, %v1076
        %v1087 = vpop.permute.xlu0 %1086
        %1090 = vset.pattern.permute.xlu0 0
        %1091 = vperm.xlu0 %1090, %v1077
        %v1092 = vpop.permute.xlu0 %1091
        %1095 = vset.pattern.permute.xlu0 0
        %1096 = vperm.xlu0 %1095, %v1078
        %v1097 = vpop.permute.xlu0 %1096
        %v1099 = vmul.f32 %v1057, %v1082
        %v1100 = vmul.f32 %v1059, %v1082
        %v1101 = vmul.f32 %v1061, %v1087
        %v1102 = vmul.f32 %v1063, %v1087
        %v1103 = vmul.f32 %v1067, %v1092
        %v1104 = vmul.f32 %v1069, %v1092
        %v1105 = vmul.f32 %v1071, %v1097
        %v1106 = vmul.f32 %v1073, %v1097
        %v1107 = vld [vmem:[%s11] sm:$0xff]
        %v1108 = vld [vmem:[%s11 + $0x8] sm:$0xff]
        %v1109 = vld [vmem:[%s11 + $0x10] sm:$0xff]
        %v1110 = vld [vmem:[%s11 + $0x18] sm:$0xff]
        %1112 = vset.pattern.permute.xlu0 0
        %1113 = vperm.xlu0 %1112, %v1107
        %v1114 = vpop.permute.xlu0 %1113
        %1117 = vset.pattern.permute.xlu0 0
        %1118 = vperm.xlu0 %1117, %v1108
        %v1119 = vpop.permute.xlu0 %1118
        %1122 = vset.pattern.permute.xlu0 0
        %1123 = vperm.xlu0 %1122, %v1109
        %v1124 = vpop.permute.xlu0 %1123
        %1127 = vset.pattern.permute.xlu0 0
        %1128 = vperm.xlu0 %1127, %v1110
        %v1129 = vpop.permute.xlu0 %1128
        %v1131 = vadd.f32 %v1099, %v1114
        %v1132 = vadd.f32 %v1100, %v1114
        %v1133 = vadd.f32 %v1101, %v1119
        %v1134 = vadd.f32 %v1102, %v1119
        %v1135 = vadd.f32 %v1103, %v1124
        %v1136 = vadd.f32 %v1104, %v1124
        %v1137 = vadd.f32 %v1105, %v1129
        %v1138 = vadd.f32 %v1106, %v1129
        %v1139 = vmax.f32 %v1131, 0.0
        %v1140 = vmax.f32 %v1132, 0.0
        %v1141 = vmax.f32 %v1133, 0.0
        %v1142 = vmax.f32 %v1134, 0.0
        %v1143 = vmax.f32 %v1135, 0.0
        %v1144 = vmax.f32 %v1136, 0.0
        %v1145 = vmax.f32 %v1137, 0.0
        %v1146 = vmax.f32 %v1138, 0.0
        %v1147 = vlaneseq
        %v1148 = vshrl.u32 %v1147, 7
        %v1149 = vsub.s32 0, %v1148
        %v1150 = vrot.slane %v824, %v1149
        %v1151 = vlaneseq
        %v1152 = vshrl.u32 %v1151, 7
        %v1153 = vsub.s32 0, %v1152
        %v1154 = vrot.slane %v825, %v1153
        %v1155 = vmul.f32 %v1139, %v1150
        %v1156 = vmul.f32 %v1140, %v1154
        %v1157 = vmul.f32 %v1141, %v1150
        %v1158 = vmul.f32 %v1142, %v1154
        %v1159 = vmul.f32 %v1143, %v1150
        %v1160 = vmul.f32 %v1144, %v1154
        %v1161 = vmul.f32 %v1145, %v1150
        %v1162 = vmul.f32 %v1146, %v1154
        %v1163 = vmax.f32 %v1155, %v1156
        %1164 = vmax.xlane.f32.xlu0 %v1163
        %v1165 = vpop.xlane.xlu0 %1164
        %v1166 = vmax.f32 %v1157, %v1158
        %1167 = vmax.xlane.f32.xlu0 %v1166
        %v1168 = vpop.xlane.xlu0 %1167
        %v1169 = vmax.f32 %v1159, %v1160
        %1170 = vmax.xlane.f32.xlu0 %v1169
        %v1171 = vpop.xlane.xlu0 %1170
        %v1172 = vmax.f32 %v1161, %v1162
        %1173 = vmax.xlane.f32.xlu0 %v1172
        %v1174 = vpop.xlane.xlu0 %1173
        %v1175 = vld [vmem:[%s667] sm:$0xff]
        %v1176 = vld [vmem:[%s667 + $0x8] sm:$0xff]
        %v1177 = vld [vmem:[%s667 + $0x10] sm:$0xff]
        %v1178 = vld [vmem:[%s667 + $0x18] sm:$0xff]
        %v1179 = vmax.f32 %v1175, %v1165
        %v1180 = vmax.f32 %v1176, %v1168
        %v1181 = vmax.f32 %v1177, %v1171
        %v1182 = vmax.f32 %v1178, %v1174
        %vm1183 = vcmask 7168
        %1184 = vst.msk [vmem:[%s667] sm:$0xff] %vm1183, %v1179
        %1185 = vst.msk [vmem:[%s667 + $0x8] sm:$0xff] %vm1183, %v1180
        %1186 = vst.msk [vmem:[%s667 + $0x10] sm:$0xff] %vm1183, %v1181
        %1187 = vst.msk [vmem:[%s667 + $0x18] sm:$0xff] %vm1183, %v1182
        %v1188 = vlaneseq
        %v1189 = vshrl.u32 %v1188, 7
        %v1190 = vsub.s32 1, %v1189
        %v1191 = vrot.slane %v824, %v1190
        %v1192 = vlaneseq
        %v1193 = vshrl.u32 %v1192, 7
        %v1194 = vsub.s32 1, %v1193
        %v1195 = vrot.slane %v825, %v1194
        %v1196 = vmul.f32 %v1139, %v1191
        %v1197 = vmul.f32 %v1140, %v1195
        %v1198 = vmul.f32 %v1141, %v1191
        %v1199 = vmul.f32 %v1142, %v1195
        %v1200 = vmul.f32 %v1143, %v1191
        %v1201 = vmul.f32 %v1144, %v1195
        %v1202 = vmul.f32 %v1145, %v1191
        %v1203 = vmul.f32 %v1146, %v1195
        %v1204 = vmax.f32 %v1196, %v1197
        %1205 = vmax.xlane.f32.xlu0 %v1204
        %v1206 = vpop.xlane.xlu0 %1205
        %v1207 = vmax.f32 %v1198, %v1199
        %1208 = vmax.xlane.f32.xlu0 %v1207
        %v1209 = vpop.xlane.xlu0 %1208
        %v1210 = vmax.f32 %v1200, %v1201
        %1211 = vmax.xlane.f32.xlu0 %v1210
        %v1212 = vpop.xlane.xlu0 %1211
        %v1213 = vmax.f32 %v1202, %v1203
        %1214 = vmax.xlane.f32.xlu0 %v1213
        %v1215 = vpop.xlane.xlu0 %1214
        %v1216 = vld [vmem:[%s667] sm:$0xff]
        %v1217 = vld [vmem:[%s667 + $0x8] sm:$0xff]
        %v1218 = vld [vmem:[%s667 + $0x10] sm:$0xff]
        %v1219 = vld [vmem:[%s667 + $0x18] sm:$0xff]
        %v1220 = vmax.f32 %v1216, %v1206
        %v1221 = vmax.f32 %v1217, %v1209
        %v1222 = vmax.f32 %v1218, %v1212
        %v1223 = vmax.f32 %v1219, %v1215
        %vm1224 = vcmask 15368
        %1225 = vst.msk [vmem:[%s667] sm:$0xff] %vm1224, %v1220
        %1226 = vst.msk [vmem:[%s667 + $0x8] sm:$0xff] %vm1224, %v1221
        %1227 = vst.msk [vmem:[%s667 + $0x10] sm:$0xff] %vm1224, %v1222
        %1228 = vst.msk [vmem:[%s667 + $0x18] sm:$0xff] %vm1224, %v1223
        %v1229 = vlaneseq
        %v1230 = vshrl.u32 %v1229, 7
        %v1231 = vsub.s32 2, %v1230
        %v1232 = vrot.slane %v824, %v1231
        %v1233 = vlaneseq
        %v1234 = vshrl.u32 %v1233, 7
        %v1235 = vsub.s32 2, %v1234
        %v1236 = vrot.slane %v825, %v1235
        %v1237 = vmul.f32 %v1139, %v1232
        %v1238 = vmul.f32 %v1140, %v1236
        %v1239 = vmul.f32 %v1141, %v1232
        %v1240 = vmul.f32 %v1142, %v1236
        %v1241 = vmul.f32 %v1143, %v1232
        %v1242 = vmul.f32 %v1144, %v1236
        %v1243 = vmul.f32 %v1145, %v1232
        %v1244 = vmul.f32 %v1146, %v1236
        %v1245 = vmax.f32 %v1237, %v1238
        %1246 = vmax.xlane.f32.xlu0 %v1245
        %v1247 = vpop.xlane.xlu0 %1246
        %v1248 = vmax.f32 %v1239, %v1240
        %1249 = vmax.xlane.f32.xlu0 %v1248
        %v1250 = vpop.xlane.xlu0 %1249
        %v1251 = vmax.f32 %v1241, %v1242
        %1252 = vmax.xlane.f32.xlu0 %v1251
        %v1253 = vpop.xlane.xlu0 %1252
        %v1254 = vmax.f32 %v1243, %v1244
        %1255 = vmax.xlane.f32.xlu0 %v1254
        %v1256 = vpop.xlane.xlu0 %1255
        %v1257 = vld [vmem:[%s667] sm:$0xff]
        %v1258 = vld [vmem:[%s667 + $0x8] sm:$0xff]
        %v1259 = vld [vmem:[%s667 + $0x10] sm:$0xff]
        %v1260 = vld [vmem:[%s667 + $0x18] sm:$0xff]
        %v1261 = vmax.f32 %v1257, %v1247
        %v1262 = vmax.f32 %v1258, %v1250
        %v1263 = vmax.f32 %v1259, %v1253
        %v1264 = vmax.f32 %v1260, %v1256
        %vm1265 = vcmask 23568
        %1266 = vst.msk [vmem:[%s667] sm:$0xff] %vm1265, %v1261
        %1267 = vst.msk [vmem:[%s667 + $0x8] sm:$0xff] %vm1265, %v1262
        %1268 = vst.msk [vmem:[%s667 + $0x10] sm:$0xff] %vm1265, %v1263
        %1269 = vst.msk [vmem:[%s667 + $0x18] sm:$0xff] %vm1265, %v1264
        %v1270 = vlaneseq
        %v1271 = vshrl.u32 %v1270, 7
        %v1272 = vsub.s32 3, %v1271
        %v1273 = vrot.slane %v824, %v1272
        %v1274 = vlaneseq
        %v1275 = vshrl.u32 %v1274, 7
        %v1276 = vsub.s32 3, %v1275
        %v1277 = vrot.slane %v825, %v1276
        %v1278 = vmul.f32 %v1139, %v1273
        %v1279 = vmul.f32 %v1140, %v1277
        %v1280 = vmul.f32 %v1141, %v1273
        %v1281 = vmul.f32 %v1142, %v1277
        %v1282 = vmul.f32 %v1143, %v1273
        %v1283 = vmul.f32 %v1144, %v1277
        %v1284 = vmul.f32 %v1145, %v1273
        %v1285 = vmul.f32 %v1146, %v1277
        %v1286 = vmax.f32 %v1278, %v1279
        %1287 = vmax.xlane.f32.xlu0 %v1286
        %v1288 = vpop.xlane.xlu0 %1287
        %v1289 = vmax.f32 %v1280, %v1281
        %1290 = vmax.xlane.f32.xlu0 %v1289
        %v1291 = vpop.xlane.xlu0 %1290
        %v1292 = vmax.f32 %v1282, %v1283
        %1293 = vmax.xlane.f32.xlu0 %v1292
        %v1294 = vpop.xlane.xlu0 %1293
        %v1295 = vmax.f32 %v1284, %v1285
        %1296 = vmax.xlane.f32.xlu0 %v1295
        %v1297 = vpop.xlane.xlu0 %1296
        %v1298 = vld [vmem:[%s667] sm:$0xff]
        %v1299 = vld [vmem:[%s667 + $0x8] sm:$0xff]
        %v1300 = vld [vmem:[%s667 + $0x10] sm:$0xff]
        %v1301 = vld [vmem:[%s667 + $0x18] sm:$0xff]
        %v1302 = vmax.f32 %v1298, %v1288
        %v1303 = vmax.f32 %v1299, %v1291
        %v1304 = vmax.f32 %v1300, %v1294
        %v1305 = vmax.f32 %v1301, %v1297
        %vm1306 = vcmask 31768
        %1307 = vst.msk [vmem:[%s667] sm:$0xff] %vm1306, %v1302
        %1308 = vst.msk [vmem:[%s667 + $0x8] sm:$0xff] %vm1306, %v1303
        %1309 = vst.msk [vmem:[%s667 + $0x10] sm:$0xff] %vm1306, %v1304
        %1310 = vst.msk [vmem:[%s667 + $0x18] sm:$0xff] %vm1306, %v1305
        %v1311 = vlaneseq
        %v1312 = vshrl.u32 %v1311, 7
        %v1313 = vsub.s32 4, %v1312
        %v1314 = vrot.slane %v824, %v1313
        %v1315 = vlaneseq
        %v1316 = vshrl.u32 %v1315, 7
        %v1317 = vsub.s32 4, %v1316
        %v1318 = vrot.slane %v825, %v1317
        %v1319 = vmul.f32 %v1139, %v1314
        %v1320 = vmul.f32 %v1140, %v1318
        %v1321 = vmul.f32 %v1141, %v1314
        %v1322 = vmul.f32 %v1142, %v1318
        %v1323 = vmul.f32 %v1143, %v1314
        %v1324 = vmul.f32 %v1144, %v1318
        %v1325 = vmul.f32 %v1145, %v1314
        %v1326 = vmul.f32 %v1146, %v1318
        %v1327 = vmax.f32 %v1319, %v1320
        %1328 = vmax.xlane.f32.xlu0 %v1327
        %v1329 = vpop.xlane.xlu0 %1328
        %v1330 = vmax.f32 %v1321, %v1322
        %1331 = vmax.xlane.f32.xlu0 %v1330
        %v1332 = vpop.xlane.xlu0 %1331
        %v1333 = vmax.f32 %v1323, %v1324
        %1334 = vmax.xlane.f32.xlu0 %v1333
        %v1335 = vpop.xlane.xlu0 %1334
        %v1336 = vmax.f32 %v1325, %v1326
        %1337 = vmax.xlane.f32.xlu0 %v1336
        %v1338 = vpop.xlane.xlu0 %1337
        %v1339 = vld [vmem:[%s667] sm:$0xff]
        %v1340 = vld [vmem:[%s667 + $0x8] sm:$0xff]
        %v1341 = vld [vmem:[%s667 + $0x10] sm:$0xff]
        %v1342 = vld [vmem:[%s667 + $0x18] sm:$0xff]
        %v1343 = vmax.f32 %v1339, %v1329
        %v1344 = vmax.f32 %v1340, %v1332
        %v1345 = vmax.f32 %v1341, %v1335
        %v1346 = vmax.f32 %v1342, %v1338
        %vm1347 = vcmask 39968
        %1348 = vst.msk [vmem:[%s667] sm:$0xff] %vm1347, %v1343
        %1349 = vst.msk [vmem:[%s667 + $0x8] sm:$0xff] %vm1347, %v1344
        %1350 = vst.msk [vmem:[%s667 + $0x10] sm:$0xff] %vm1347, %v1345
        %1351 = vst.msk [vmem:[%s667 + $0x18] sm:$0xff] %vm1347, %v1346
        %v1352 = vlaneseq
        %v1353 = vshrl.u32 %v1352, 7
        %v1354 = vsub.s32 5, %v1353
        %v1355 = vrot.slane %v824, %v1354
        %v1356 = vlaneseq
        %v1357 = vshrl.u32 %v1356, 7
        %v1358 = vsub.s32 5, %v1357
        %v1359 = vrot.slane %v825, %v1358
        %v1360 = vmul.f32 %v1139, %v1355
        %v1361 = vmul.f32 %v1140, %v1359
        %v1362 = vmul.f32 %v1141, %v1355
        %v1363 = vmul.f32 %v1142, %v1359
        %v1364 = vmul.f32 %v1143, %v1355
        %v1365 = vmul.f32 %v1144, %v1359
        %v1366 = vmul.f32 %v1145, %v1355
        %v1367 = vmul.f32 %v1146, %v1359
        %v1368 = vmax.f32 %v1360, %v1361
        %1369 = vmax.xlane.f32.xlu0 %v1368
        %v1370 = vpop.xlane.xlu0 %1369
        %v1371 = vmax.f32 %v1362, %v1363
        %1372 = vmax.xlane.f32.xlu0 %v1371
        %v1373 = vpop.xlane.xlu0 %1372
        %v1374 = vmax.f32 %v1364, %v1365
        %1375 = vmax.xlane.f32.xlu0 %v1374
        %v1376 = vpop.xlane.xlu0 %1375
        %v1377 = vmax.f32 %v1366, %v1367
        %1378 = vmax.xlane.f32.xlu0 %v1377
        %v1379 = vpop.xlane.xlu0 %1378
        %v1380 = vld [vmem:[%s667] sm:$0xff]
        %v1381 = vld [vmem:[%s667 + $0x8] sm:$0xff]
        %v1382 = vld [vmem:[%s667 + $0x10] sm:$0xff]
        %v1383 = vld [vmem:[%s667 + $0x18] sm:$0xff]
        %v1384 = vmax.f32 %v1380, %v1370
        %v1385 = vmax.f32 %v1381, %v1373
        %v1386 = vmax.f32 %v1382, %v1376
        %v1387 = vmax.f32 %v1383, %v1379
        %vm1388 = vcmask 48168
        %1389 = vst.msk [vmem:[%s667] sm:$0xff] %vm1388, %v1384
        %1390 = vst.msk [vmem:[%s667 + $0x8] sm:$0xff] %vm1388, %v1385
        %1391 = vst.msk [vmem:[%s667 + $0x10] sm:$0xff] %vm1388, %v1386
        %1392 = vst.msk [vmem:[%s667 + $0x18] sm:$0xff] %vm1388, %v1387
        %v1393 = vlaneseq
        %v1394 = vshrl.u32 %v1393, 7
        %v1395 = vsub.s32 6, %v1394
        %v1396 = vrot.slane %v824, %v1395
        %v1397 = vlaneseq
        %v1398 = vshrl.u32 %v1397, 7
        %v1399 = vsub.s32 6, %v1398
        %v1400 = vrot.slane %v825, %v1399
        %v1401 = vmul.f32 %v1139, %v1396
        %v1402 = vmul.f32 %v1140, %v1400
        %v1403 = vmul.f32 %v1141, %v1396
        %v1404 = vmul.f32 %v1142, %v1400
        %v1405 = vmul.f32 %v1143, %v1396
        %v1406 = vmul.f32 %v1144, %v1400
        %v1407 = vmul.f32 %v1145, %v1396
        %v1408 = vmul.f32 %v1146, %v1400
        %v1409 = vmax.f32 %v1401, %v1402
        %1410 = vmax.xlane.f32.xlu0 %v1409
        %v1411 = vpop.xlane.xlu0 %1410
        %v1412 = vmax.f32 %v1403, %v1404
        %1413 = vmax.xlane.f32.xlu0 %v1412
        %v1414 = vpop.xlane.xlu0 %1413
        %v1415 = vmax.f32 %v1405, %v1406
        %1416 = vmax.xlane.f32.xlu0 %v1415
        %v1417 = vpop.xlane.xlu0 %1416
        %v1418 = vmax.f32 %v1407, %v1408
        %1419 = vmax.xlane.f32.xlu0 %v1418
        %v1420 = vpop.xlane.xlu0 %1419
        %v1421 = vld [vmem:[%s667] sm:$0xff]
        %v1422 = vld [vmem:[%s667 + $0x8] sm:$0xff]
        %v1423 = vld [vmem:[%s667 + $0x10] sm:$0xff]
        %v1424 = vld [vmem:[%s667 + $0x18] sm:$0xff]
        %v1425 = vmax.f32 %v1421, %v1411
        %v1426 = vmax.f32 %v1422, %v1414
        %v1427 = vmax.f32 %v1423, %v1417
        %v1428 = vmax.f32 %v1424, %v1420
        %vm1429 = vcmask 56368
        %1430 = vst.msk [vmem:[%s667] sm:$0xff] %vm1429, %v1425
        %1431 = vst.msk [vmem:[%s667 + $0x8] sm:$0xff] %vm1429, %v1426
        %1432 = vst.msk [vmem:[%s667 + $0x10] sm:$0xff] %vm1429, %v1427
        %1433 = vst.msk [vmem:[%s667 + $0x18] sm:$0xff] %vm1429, %v1428
        %v1434 = vlaneseq
        %v1435 = vshrl.u32 %v1434, 7
        %v1436 = vsub.s32 7, %v1435
        %v1437 = vrot.slane %v824, %v1436
        %v1438 = vlaneseq
        %v1439 = vshrl.u32 %v1438, 7
        %v1440 = vsub.s32 7, %v1439
        %v1441 = vrot.slane %v825, %v1440
        %v1442 = vmul.f32 %v1139, %v1437
        %v1443 = vmul.f32 %v1140, %v1441
        %v1444 = vmul.f32 %v1141, %v1437
        %v1445 = vmul.f32 %v1142, %v1441
        %v1446 = vmul.f32 %v1143, %v1437
        %v1447 = vmul.f32 %v1144, %v1441
        %v1448 = vmul.f32 %v1145, %v1437
        %v1449 = vmul.f32 %v1146, %v1441
        %v1450 = vmax.f32 %v1442, %v1443
        %1451 = vmax.xlane.f32.xlu0 %v1450
        %v1452 = vpop.xlane.xlu0 %1451
        %v1453 = vmax.f32 %v1444, %v1445
        %1454 = vmax.xlane.f32.xlu0 %v1453
        %v1455 = vpop.xlane.xlu0 %1454
        %v1456 = vmax.f32 %v1446, %v1447
        %1457 = vmax.xlane.f32.xlu0 %v1456
        %v1458 = vpop.xlane.xlu0 %1457
        %v1459 = vmax.f32 %v1448, %v1449
        %1460 = vmax.xlane.f32.xlu0 %v1459
        %v1461 = vpop.xlane.xlu0 %1460
        %v1462 = vld [vmem:[%s667] sm:$0xff]
        %v1463 = vld [vmem:[%s667 + $0x8] sm:$0xff]
        %v1464 = vld [vmem:[%s667 + $0x10] sm:$0xff]
        %v1465 = vld [vmem:[%s667 + $0x18] sm:$0xff]
        %v1466 = vmax.f32 %v1462, %v1452
        %v1467 = vmax.f32 %v1463, %v1455
        %v1468 = vmax.f32 %v1464, %v1458
        %v1469 = vmax.f32 %v1465, %v1461
        %vm1470 = vcmask 64568
        %1471 = vst.msk [vmem:[%s667] sm:$0xff] %vm1470, %v1466
        %1472 = vst.msk [vmem:[%s667 + $0x8] sm:$0xff] %vm1470, %v1467
        %1473 = vst.msk [vmem:[%s667 + $0x10] sm:$0xff] %vm1470, %v1468
        %1474 = vst.msk [vmem:[%s667 + $0x18] sm:$0xff] %vm1470, %v1469
        %s1475 = sand.u32 %s355, 1
        %s1476 = scalar_lea.sflag [#allocation4], %s1475
        %s1477 = sand.u32 %s355, 1
        %s1478 = smul.addr %s1477, 16
        %s1479 = scalar_lea.vmem [#allocation3], %s1478
        %p1480 = scmp.lt.s32.totalorder %s33, 0
        %s1481 = scalar_select %p1480, %s33, 0
        %p1482 = scmp.lt.s32.totalorder %s34, 1
        %s1483 = scalar_select %p1482, %s34, 1
        %s1484 = smul.addr %s1483, 4
        %s1485 = smul.addr %s1481, 8
        %s1486 = sadd.s32 %s1484, %s1485
        %s1487 = smul.addr %s1486, 8
        %s1488 = scalar_lea.vmem %s13, %s1487
        // Predicated region
        $region111: #{tpu_custom_call.1} parent=101 // pred_check
          %p1489 = pneg %p365
        $region112: #{tpu_custom_call.1} parent=101 // pred_check_branch
          %1491 = sbr.rel (%p1489) target = $region114
        $region113: #{tpu_custom_call.1} parent=101 // pred_region
          %s1492 = smul.u32 %s33, 3
          %s1493 = sadd.s32 %s1492, %s35
          %s1494 = smul.u32 2, %s1493
          %s1496 = ssub.s32 256, 256
          %1497 = vsyncadd %s1476, %s1496
          %s1498 = smul.addr %s34, 6
          %s1499 = sadd.s32 %s1494, %s1498
          %s1500 = smul.addr %s1499, 128
          %s1501 = scalar_lea.hbm %s12, %s1500
          %s1503 = sshll.u32 %s1479, 4
          %s1504 = int_to_ptr.vmem [resolvable:$true] %s1503
          %1506 = dma.vmem_to_hbm [thread:$0]  %s1504, 256, %s1501, %s1476
        $region114: #{tpu_custom_call.1} parent=101 // pred_fallthru
          _
        // Predicated region
        $region115: #{tpu_custom_call.1} parent=101 // pred_check
          %p1507 = pneg %p393
        $region116: #{tpu_custom_call.1} parent=101 // pred_check_branch
          %1509 = sbr.rel (%p1507) target = $region118
        $region117: #{tpu_custom_call.1} parent=101 // pred_region
          _
        $region118: #{tpu_custom_call.1} parent=101 // pred_fallthru
          _
      $region102: #{tpu_custom_call.1} parent=5 // pred_fallthru
        _
      %p1510 = scmp.le.s32.totalorder 2, %s23
      // Predicated region
      $region119: #{tpu_custom_call.1} parent=5 // pred_check
        %p1511 = pneg %p1510
      $region120: #{tpu_custom_call.1} parent=5 // pred_check_branch
        %1513 = sbr.rel (%p1511) target = $region122
      $region121: #{tpu_custom_call.1} parent=5 // pred_region
        %s1514 = ssub.s32 %s23, 2
        // Predicated region
        $region123: #{tpu_custom_call.1} parent=121 // pred_check
          %p1515 = pneg %p371
        $region124: #{tpu_custom_call.1} parent=121 // pred_check_branch
          %1517 = sbr.rel (%p1515) target = $region126
        $region125: #{tpu_custom_call.1} parent=121 // pred_region
          %s1518 = sand.u32 %s356, 1
          %s1519 = scalar_lea.sflag [#allocation4], %s1518
          %s1520 = sand.u32 %s356, 1
          %s1521 = smul.addr %s1520, 16
          %s1522 = scalar_lea.vmem [#allocation3], %s1521
          %1523 = dma.done %s1519, 256
        $region126: #{tpu_custom_call.1} parent=121 // pred_fallthru
          _
        // Predicated region
        $region127: #{tpu_custom_call.1} parent=121 // pred_check
          %p1524 = pneg %p399
        $region128: #{tpu_custom_call.1} parent=121 // pred_check_branch
          %1526 = sbr.rel (%p1524) target = $region130
        $region129: #{tpu_custom_call.1} parent=121 // pred_region
          %p1527 = scmp.lt.s32.totalorder %s36, 0
          %s1528 = scalar_select %p1527, %s36, 0
          %p1529 = scmp.lt.s32.totalorder %s37, 1
          %s1530 = scalar_select %p1529, %s37, 1
          %s1531 = smul.addr %s1530, 4
          %s1532 = smul.addr %s1528, 8
          %s1533 = sadd.s32 %s1531, %s1532
          %s1534 = smul.addr %s1533, 8
          %s1535 = scalar_lea.vmem %s13, %s1534
        $region130: #{tpu_custom_call.1} parent=121 // pred_fallthru
          _
      $region122: #{tpu_custom_call.1} parent=5 // pred_fallthru
        _
    $region6: #{tpu_custom_call.1} parent=1 // loop_footer
      %s27 = sadd.s32 1, %s23
    $region7: #{tpu_custom_call.1} parent=1 // loop_footer_branch
      %22 = sbr.rel target = $region3
    $region8: #{tpu_custom_call.1} parent=1 // loop_exit
      _
    %1536 = vsyncpa [#allocation4], 1
    %s1537 = scalar_lea.sflag [#allocation4], 1
    %1538 = vsyncpa %s1537, 1

</llo_original>
